<compile_context>
chip_gen: v5e
topology: v5e:2x2
jax: 0.10.0
libtpu: 0.0.40
codegen_flags: <defaults>
</compile_context>

<pallas_src>
import functools

import numpy as np

import jax
import jax.numpy as jnp
from jax.experimental import pallas as pl
from jax.experimental.pallas import tpu as pltpu


def _vmem_spec():
    return pl.BlockSpec(memory_space=pltpu.MemorySpace.VMEM)


# ---------------------------------------------------------------------------
# Fused kernel: conv1+pool+relu -> conv2+pool+relu -> conv3+relu -> fc1+relu
#               -> (dropout: eval identity) -> fc2 -> argmax
# ---------------------------------------------------------------------------
def fused_kernel(x_ref, w1_ref, b1_ref, w2_ref, b2_ref, w3_ref, b3_ref,
                 w4_ref, b4_ref, w5_ref, b5_ref, logits_ref, idx_ref):
    # x_ref : (N*16, 16)  f32   input rows, image-major
    # w1_ref: (3, 16, 2*7*c1) bf16  banded conv1 weights; out lanes = (dw, pw, c1)
    # w2_ref: (3, 7*c1, 2*2*c2) bf16 banded conv2 weights; out lanes = (dw2, pw2, c2)
    # w3_ref: (4*c2, c3) bf16       conv3 (2x2 -> 1x1) as a plain matmul
    # w4_ref: (c3, h) bf16, w5_ref: (h, out) bf16
    # biases: f32 rows, pre-tiled to match the lane packing above
    nb = x_ref.shape[0] // 16
    c1 = b1_ref.shape[1] // 7
    c2 = b2_ref.shape[1] // 2
    bf = jnp.bfloat16
    f32 = jnp.float32

    feats = []
    for n in range(nb):                       # static unroll over the tiny batch
        # ----- conv1 (3x3, Cin=1) + maxpool(2x2) + relu --------------------
        # Width taps and the width pool member are folded into w1; one matmul
        # per kernel row.  acc rows = conv output rows oh (14),
        # acc lanes = (dw, pw, c1) with ow = 2*pw + dw.
        acc = None
        for kh in range(3):
            lhs = x_ref[pl.ds(n * 16 + kh, 14), :].astype(bf)            # (14, 16)
            part = jnp.dot(lhs, w1_ref[kh], preferred_element_type=f32)  # (14, 2*7*c1)
            acc = part if acc is None else acc + part
        wp = jnp.maximum(acc[:, :7 * c1], acc[:, 7 * c1:])               # width pool
        rows = [jnp.maximum(wp[2 * p:2 * p + 1, :], wp[2 * p + 1:2 * p + 2, :])
                for p in range(7)]                                       # height pool
        h1 = jnp.maximum(jnp.concatenate(rows, axis=0) + b1_ref[...], 0.0)  # (7, 7*c1)

        # ----- conv2 (3x3) + maxpool(2x2) + relu ---------------------------
        # h1 lanes = (pw, c1); banded w2 contracts over (pw, c1) per kernel
        # row, output lanes = (dw2, pw2, c2) with ow2 = 2*pw2 + dw2 (only the
        # columns the 2x2 pool actually uses are produced).
        acc2 = None
        for kh in range(3):
            lhs = h1[kh:kh + 5, :].astype(bf)                            # (5, 7*c1)
            part = jnp.dot(lhs, w2_ref[kh], preferred_element_type=f32)  # (5, 4*c2)
            acc2 = part if acc2 is None else acc2 + part
        top = jnp.maximum(acc2[0:1, :], acc2[1:2, :])                    # height pool
        bot = jnp.maximum(acc2[2:3, :], acc2[3:4, :])
        hp = jnp.concatenate([top, bot], axis=0)                         # (2, 4*c2)
        wp2 = jnp.maximum(hp[:, :2 * c2], hp[:, 2 * c2:])                # width pool
        h2 = jnp.maximum(wp2 + b2_ref[...], 0.0)                         # (2, 2*c2)
        # flatten (kh3, kw3, c2) -> 4*c2 lanes for conv3
        feats.append(jnp.concatenate([h2[0:1, :], h2[1:2, :]], axis=1))  # (1, 4*c2)

    feat = jnp.concatenate(feats, axis=0).astype(bf)                     # (N, 4*c2)

    # ----- conv3 (2x2 -> 1x1 == matmul) + relu, fc1 + relu, fc2 ------------
    h3 = jnp.maximum(jnp.dot(feat, w3_ref[...], preferred_element_type=f32)
                     + b3_ref[...], 0.0)                                 # (N, c3)
    h4 = jnp.maximum(jnp.dot(h3.astype(bf), w4_ref[...],
                             preferred_element_type=f32) + b4_ref[...], 0.0)  # (N, h)
    # TODO(synk): training-mode dropout(p) not implemented; eval mode => identity.
    logits = jnp.dot(h4.astype(bf), w5_ref[...],
                     preferred_element_type=f32) + b5_ref[...]           # (N, out)
    logits_ref[...] = logits

    # argmax over dim=1, first occurrence (matches torch.max indices).
    # (N,1) int32 store is masked but negligible at this batch size; move to
    # SMEM / lane-aligned output if batch grows.
    m = jnp.max(logits, axis=1, keepdims=True)
    col = jax.lax.broadcasted_iota(jnp.int32, logits.shape, 1)
    idx_ref[...] = jnp.min(jnp.where(logits == m, col, logits.shape[1]),
                           axis=1, keepdims=True)


# ---------------------------------------------------------------------------
# One-time weight packing (numpy, outside jit): banded conv matrices + biases
# ---------------------------------------------------------------------------
def pack_params(params):
    c1 = params["w1"].shape[0]
    c2 = params["w2"].shape[0]
    c3 = params["w3"].shape[0]
    bf = jnp.bfloat16

    w1 = np.asarray(params["w1"], np.float32)          # (c1, 1, 3, 3)
    W1 = np.zeros((3, 16, 2 * 7 * c1), np.float32)     # out lanes (dw, pw, c1)
    for kh in range(3):
        for kw in range(3):
            for dw in range(2):
                for pw in range(7):
                    col = (dw * 7 + pw) * c1
                    W1[kh, 2 * pw + dw + kw, col:col + c1] = w1[:, 0, kh, kw]

    w2 = np.asarray(params["w2"], np.float32)          # (c2, c1, 3, 3)
    W2 = np.zeros((3, 7 * c1, 4 * c2), np.float32)     # out lanes (dw2, pw2, c2)
    for kh in range(3):
        for kw in range(3):
            for dw2 in range(2):
                for pw2 in range(2):
                    ow2 = 2 * pw2 + dw2
                    r0 = (ow2 + kw) * c1
                    co = (dw2 * 2 + pw2) * c2
                    W2[kh, r0:r0 + c1, co:co + c2] = w2[:, :, kh, kw].T

    w3 = np.asarray(params["w3"], np.float32)          # (c3, c2, 2, 2)
    W3 = np.zeros((4 * c2, c3), np.float32)            # rows (kh, kw, c2)
    for kh in range(2):
        for kw in range(2):
            r0 = (kh * 2 + kw) * c2
            W3[r0:r0 + c2, :] = w3[:, :, kh, kw].T

    f32 = np.float32
    return dict(
        W1=jnp.asarray(W1, bf),
        b1=jnp.asarray(np.tile(np.asarray(params["b1"], f32), 7)[None, :]),
        W2=jnp.asarray(W2, bf),
        b2=jnp.asarray(np.tile(np.asarray(params["b2"], f32), 2)[None, :]),
        W3=jnp.asarray(W3, bf),
        b3=jnp.asarray(np.asarray(params["b3"], f32)[None, :]),
        W4=jnp.asarray(np.asarray(params["w4"], f32).T, bf),
        b4=jnp.asarray(np.asarray(params["b4"], f32)[None, :]),
        W5=jnp.asarray(np.asarray(params["w5"], f32).T, bf),
        b5=jnp.asarray(np.asarray(params["b5"], f32)[None, :]),
    )


# ---------------------------------------------------------------------------
# Forward wrapper: one pallas_call, minimal XLA-side work
# ---------------------------------------------------------------------------
@functools.partial(jax.jit, static_argnames=("subnet", "training"))
def digit_classifier_forward(x_nchw, packed, subnet=False, training=False):
    n, cin, hh, ww = x_nchw.shape
    assert cin == 1 and hh == 16 and ww == 16, "kernel specialized to 1x16x16 input"
    x = x_nchw.reshape(n * hh, ww).astype(jnp.float32)
    out_h = packed["b5"].shape[1]
    logits, idx = pl.pallas_call(
        fused_kernel,
        out_shape=(jax.ShapeDtypeStruct((n, out_h), jnp.float32),
                   jax.ShapeDtypeStruct((n, 1), jnp.int32)),
        in_specs=[_vmem_spec()] * 11,
        out_specs=(_vmem_spec(), _vmem_spec()),
    )(x, packed["W1"], packed["b1"], packed["W2"], packed["b2"],
      packed["W3"], packed["b3"], packed["W4"], packed["b4"],
      packed["W5"], packed["b5"])
    if (not training) and (not subnet):
        return idx[:, 0]          # int32 class ids (torch returns int64)
    return logits


# ---------------------------------------------------------------------------
# Deterministic parameter init (torch layouts: conv (O,I,KH,KW), linear (O,I))
# ---------------------------------------------------------------------------
def init_params(key, c1=32, c2=32, c3=64, h=100, out_h=10):
    ks = jax.random.split(key, 10)

    def w(k, shape, fan_in):
        return jax.random.normal(k, shape, jnp.float32) / jnp.sqrt(float(fan_in))

    return dict(
        w1=w(ks[0], (c1, 1, 3, 3), 9),        b1=w(ks[1], (c1,), 9),
        w2=w(ks[2], (c2, c1, 3, 3), 9 * c1),  b2=w(ks[3], (c2,), 9 * c1),
        w3=w(ks[4], (c3, c2, 2, 2), 4 * c2),  b3=w(ks[5], (c3,), 4 * c2),
        w4=w(ks[6], (h, c3), c3),             b4=w(ks[7], (h,), c3),
        w5=w(ks[8], (out_h, h), h),           b5=w(ks[9], (out_h,), h),
    )


# ---------------------------------------------------------------------------
# Pure-JAX reference (emulates the same bf16-operand / f32-accum matmuls)
# ---------------------------------------------------------------------------
def ref_forward(x_nchw, params, subnet=False, training=False):
    f32 = jnp.float32
    q = lambda a: a.astype(jnp.bfloat16)

    def conv(x, w, b):
        y = jax.lax.conv_general_dilated(
            q(x), q(w), window_strides=(1, 1), padding="VALID",
            dimension_numbers=("NCHW", "OIHW", "NCHW"),
            preferred_element_type=f32)
        return y + b[None, :, None, None]

    def maxpool2(x):
        n, c, hh, ww = x.shape
        ho, wo = hh // 2, ww // 2
        return x[:, :, :2 * ho, :2 * wo].reshape(n, c, ho, 2, wo, 2).max(axis=(3, 5))

    x = jax.nn.relu(maxpool2(conv(x_nchw.astype(f32), params["w1"], params["b1"])))
    x = jax.nn.relu(maxpool2(conv(x, params["w2"], params["b2"])))
    x = jax.nn.relu(conv(x, params["w3"], params["b3"]))
    x = x.reshape(-1, params["w3"].shape[0])
    x = jax.nn.relu(jnp.dot(q(x), q(params["w4"]).T,
                            preferred_element_type=f32) + params["b4"])
    x = jnp.dot(q(x), q(params["w5"]).T, preferred_element_type=f32) + params["b5"]
    if (not training) and (not subnet):
        return jnp.argmax(x, axis=1).astype(jnp.int32)
    return x


if __name__ == "__main__":
    key = jax.random.PRNGKey(0)
    kx, kp = jax.random.split(key)
    # 16x16 input makes the module's view(-1, c3) exact: 16->14->7->5->2->1
    x = jax.random.normal(kx, (2, 1, 16, 16), jnp.float32)   # NCHW (torch convention)
    params = init_params(kp)
    packed = pack_params(params)

    # eval mode, subnet=False -> class indices
    preds = jax.block_until_ready(
        digit_classifier_forward(x, packed, subnet=False, training=False))
    assert preds.shape == (2,) and preds.dtype == jnp.int32

    # numerical check on the logits path (subnet=True) against the bf16 reference
    logits = jax.block_until_ready(
        digit_classifier_forward(x, packed, subnet=True, training=False))
    ref_logits = ref_forward(x, params, subnet=True, training=False)
    assert jnp.allclose(logits, ref_logits, atol=2e-3, rtol=2e-3), (logits, ref_logits)
    ref_preds = ref_forward(x, params, subnet=False, training=False)
    assert jnp.array_equal(preds, ref_preds)

    print("KERNEL_OK")
</pallas_src>

<mosaic_0001>
module attributes {stable_mosaic.version = 11 : i64} {
  func.func @fused_kernel(%arg0: memref<32x16xf32, #tpu.memory_space<vmem>>, %arg1: memref<3x16x448xbf16, #tpu.memory_space<vmem>>, %arg2: memref<1x224xf32, #tpu.memory_space<vmem>>, %arg3: memref<3x224x128xbf16, #tpu.memory_space<vmem>>, %arg4: memref<1x64xf32, #tpu.memory_space<vmem>>, %arg5: memref<128x64xbf16, #tpu.memory_space<vmem>>, %arg6: memref<1x64xf32, #tpu.memory_space<vmem>>, %arg7: memref<64x100xbf16, #tpu.memory_space<vmem>>, %arg8: memref<1x100xf32, #tpu.memory_space<vmem>>, %arg9: memref<100x10xbf16, #tpu.memory_space<vmem>>, %arg10: memref<1x10xf32, #tpu.memory_space<vmem>>, %arg11: memref<2x10xf32, #tpu.memory_space<vmem>>, %arg12: memref<2x1xi32, #tpu.memory_space<vmem>>) attributes {dimension_semantics = [], scalar_prefetch = 0 : i64, scratch_operands = 0 : i64, tpu.core_type = #tpu.core_type<tc>} {
    %c0 = arith.constant 0 : index
    %c0_0 = arith.constant 0 : index
    %0 = vector.load %arg0[%c0, %c0_0] : memref<32x16xf32, #tpu.memory_space<vmem>>, vector<14x16xf32>
    %1 = arith.truncf %0 : vector<14x16xf32> to vector<14x16xbf16>
    %c0_1 = arith.constant 0 : index
    %c0_2 = arith.constant 0 : index
    %c0_3 = arith.constant 0 : index
    %2 = vector.load %arg1[%c0_1, %c0_2, %c0_3] : memref<3x16x448xbf16, #tpu.memory_space<vmem>>, vector<1x16x448xbf16>
    %3 = vector.shape_cast %2 : vector<1x16x448xbf16> to vector<16x448xbf16>
    %cst = arith.constant dense<0.000000e+00> : vector<14x448xf32>
    %4 = tpu.matmul %1, %3, %cst {dimension_numbers = #tpu.dot_dimension_numbers<[1], [0], [0], [1], [0, 0, 1, 1], [], []>} : vector<14x16xbf16>, vector<16x448xbf16>, vector<14x448xf32> -> vector<14x448xf32>
    %c1 = arith.constant 1 : index
    %c0_4 = arith.constant 0 : index
    %5 = vector.load %arg0[%c1, %c0_4] : memref<32x16xf32, #tpu.memory_space<vmem>>, vector<14x16xf32>
    %6 = arith.truncf %5 : vector<14x16xf32> to vector<14x16xbf16>
    %c1_5 = arith.constant 1 : index
    %c0_6 = arith.constant 0 : index
    %c0_7 = arith.constant 0 : index
    %7 = vector.load %arg1[%c1_5, %c0_6, %c0_7] : memref<3x16x448xbf16, #tpu.memory_space<vmem>>, vector<1x16x448xbf16>
    %8 = vector.shape_cast %7 : vector<1x16x448xbf16> to vector<16x448xbf16>
    %cst_8 = arith.constant dense<0.000000e+00> : vector<14x448xf32>
    %9 = tpu.matmul %6, %8, %cst_8 {dimension_numbers = #tpu.dot_dimension_numbers<[1], [0], [0], [1], [0, 0, 1, 1], [], []>} : vector<14x16xbf16>, vector<16x448xbf16>, vector<14x448xf32> -> vector<14x448xf32>
    %10 = arith.addf %4, %9 : vector<14x448xf32>
    %c2 = arith.constant 2 : index
    %c0_9 = arith.constant 0 : index
    %11 = vector.load %arg0[%c2, %c0_9] : memref<32x16xf32, #tpu.memory_space<vmem>>, vector<14x16xf32>
    %12 = arith.truncf %11 : vector<14x16xf32> to vector<14x16xbf16>
    %c2_10 = arith.constant 2 : index
    %c0_11 = arith.constant 0 : index
    %c0_12 = arith.constant 0 : index
    %13 = vector.load %arg1[%c2_10, %c0_11, %c0_12] : memref<3x16x448xbf16, #tpu.memory_space<vmem>>, vector<1x16x448xbf16>
    %14 = vector.shape_cast %13 : vector<1x16x448xbf16> to vector<16x448xbf16>
    %cst_13 = arith.constant dense<0.000000e+00> : vector<14x448xf32>
    %15 = tpu.matmul %12, %14, %cst_13 {dimension_numbers = #tpu.dot_dimension_numbers<[1], [0], [0], [1], [0, 0, 1, 1], [], []>} : vector<14x16xbf16>, vector<16x448xbf16>, vector<14x448xf32> -> vector<14x448xf32>
    %16 = arith.addf %10, %15 : vector<14x448xf32>
    %17 = vector.extract_strided_slice %16 {offsets = [0, 0], sizes = [14, 224], strides = [1, 1]} : vector<14x448xf32> to vector<14x224xf32>
    %18 = vector.extract_strided_slice %16 {offsets = [0, 224], sizes = [14, 224], strides = [1, 1]} : vector<14x448xf32> to vector<14x224xf32>
    %19 = arith.maximumf %17, %18 : vector<14x224xf32>
    %20 = vector.extract_strided_slice %19 {offsets = [0, 0], sizes = [1, 224], strides = [1, 1]} : vector<14x224xf32> to vector<1x224xf32>
    %21 = vector.extract_strided_slice %19 {offsets = [1, 0], sizes = [1, 224], strides = [1, 1]} : vector<14x224xf32> to vector<1x224xf32>
    %22 = arith.maximumf %20, %21 : vector<1x224xf32>
    %23 = vector.extract_strided_slice %19 {offsets = [2, 0], sizes = [1, 224], strides = [1, 1]} : vector<14x224xf32> to vector<1x224xf32>
    %24 = vector.extract_strided_slice %19 {offsets = [3, 0], sizes = [1, 224], strides = [1, 1]} : vector<14x224xf32> to vector<1x224xf32>
    %25 = arith.maximumf %23, %24 : vector<1x224xf32>
    %26 = vector.extract_strided_slice %19 {offsets = [4, 0], sizes = [1, 224], strides = [1, 1]} : vector<14x224xf32> to vector<1x224xf32>
    %27 = vector.extract_strided_slice %19 {offsets = [5, 0], sizes = [1, 224], strides = [1, 1]} : vector<14x224xf32> to vector<1x224xf32>
    %28 = arith.maximumf %26, %27 : vector<1x224xf32>
    %29 = vector.extract_strided_slice %19 {offsets = [6, 0], sizes = [1, 224], strides = [1, 1]} : vector<14x224xf32> to vector<1x224xf32>
    %30 = vector.extract_strided_slice %19 {offsets = [7, 0], sizes = [1, 224], strides = [1, 1]} : vector<14x224xf32> to vector<1x224xf32>
    %31 = arith.maximumf %29, %30 : vector<1x224xf32>
    %32 = vector.extract_strided_slice %19 {offsets = [8, 0], sizes = [1, 224], strides = [1, 1]} : vector<14x224xf32> to vector<1x224xf32>
    %33 = vector.extract_strided_slice %19 {offsets = [9, 0], sizes = [1, 224], strides = [1, 1]} : vector<14x224xf32> to vector<1x224xf32>
    %34 = arith.maximumf %32, %33 : vector<1x224xf32>
    %35 = vector.extract_strided_slice %19 {offsets = [10, 0], sizes = [1, 224], strides = [1, 1]} : vector<14x224xf32> to vector<1x224xf32>
    %36 = vector.extract_strided_slice %19 {offsets = [11, 0], sizes = [1, 224], strides = [1, 1]} : vector<14x224xf32> to vector<1x224xf32>
    %37 = arith.maximumf %35, %36 : vector<1x224xf32>
    %38 = vector.extract_strided_slice %19 {offsets = [12, 0], sizes = [1, 224], strides = [1, 1]} : vector<14x224xf32> to vector<1x224xf32>
    %39 = vector.extract_strided_slice %19 {offsets = [13, 0], sizes = [1, 224], strides = [1, 1]} : vector<14x224xf32> to vector<1x224xf32>
    %40 = arith.maximumf %38, %39 : vector<1x224xf32>
    %41 = tpu.concatenate %22, %25, %28, %31, %34, %37, %40 in 0 : vector<1x224xf32>, vector<1x224xf32>, vector<1x224xf32>, vector<1x224xf32>, vector<1x224xf32>, vector<1x224xf32>, vector<1x224xf32> -> vector<7x224xf32>
    %c0_14 = arith.constant 0 : index
    %c0_15 = arith.constant 0 : index
    %42 = vector.load %arg2[%c0_14, %c0_15] : memref<1x224xf32, #tpu.memory_space<vmem>>, vector<1x224xf32>
    %43 = vector.broadcast %42 : vector<1x224xf32> to vector<7x224xf32>
    %44 = arith.addf %41, %43 : vector<7x224xf32>
    %cst_16 = arith.constant 0.000000e+00 : f32
    %45 = vector.broadcast %cst_16 : f32 to vector<7x224xf32>
    %46 = arith.maximumf %44, %45 : vector<7x224xf32>
    %47 = vector.extract_strided_slice %46 {offsets = [0, 0], sizes = [5, 224], strides = [1, 1]} : vector<7x224xf32> to vector<5x224xf32>
    %48 = arith.truncf %47 : vector<5x224xf32> to vector<5x224xbf16>
    %c0_17 = arith.constant 0 : index
    %c0_18 = arith.constant 0 : index
    %c0_19 = arith.constant 0 : index
    %49 = vector.load %arg3[%c0_17, %c0_18, %c0_19] : memref<3x224x128xbf16, #tpu.memory_space<vmem>>, vector<1x224x128xbf16>
    %50 = vector.shape_cast %49 : vector<1x224x128xbf16> to vector<224x128xbf16>
    %cst_20 = arith.constant dense<0.000000e+00> : vector<5x128xf32>
    %51 = tpu.matmul %48, %50, %cst_20 {dimension_numbers = #tpu.dot_dimension_numbers<[1], [0], [0], [1], [0, 0, 1, 1], [], []>} : vector<5x224xbf16>, vector<224x128xbf16>, vector<5x128xf32> -> vector<5x128xf32>
    %52 = vector.extract_strided_slice %46 {offsets = [1, 0], sizes = [5, 224], strides = [1, 1]} : vector<7x224xf32> to vector<5x224xf32>
    %53 = arith.truncf %52 : vector<5x224xf32> to vector<5x224xbf16>
    %c1_21 = arith.constant 1 : index
    %c0_22 = arith.constant 0 : index
    %c0_23 = arith.constant 0 : index
    %54 = vector.load %arg3[%c1_21, %c0_22, %c0_23] : memref<3x224x128xbf16, #tpu.memory_space<vmem>>, vector<1x224x128xbf16>
    %55 = vector.shape_cast %54 : vector<1x224x128xbf16> to vector<224x128xbf16>
    %cst_24 = arith.constant dense<0.000000e+00> : vector<5x128xf32>
    %56 = tpu.matmul %53, %55, %cst_24 {dimension_numbers = #tpu.dot_dimension_numbers<[1], [0], [0], [1], [0, 0, 1, 1], [], []>} : vector<5x224xbf16>, vector<224x128xbf16>, vector<5x128xf32> -> vector<5x128xf32>
    %57 = arith.addf %51, %56 : vector<5x128xf32>
    %58 = vector.extract_strided_slice %46 {offsets = [2, 0], sizes = [5, 224], strides = [1, 1]} : vector<7x224xf32> to vector<5x224xf32>
    %59 = arith.truncf %58 : vector<5x224xf32> to vector<5x224xbf16>
    %c2_25 = arith.constant 2 : index
    %c0_26 = arith.constant 0 : index
    %c0_27 = arith.constant 0 : index
    %60 = vector.load %arg3[%c2_25, %c0_26, %c0_27] : memref<3x224x128xbf16, #tpu.memory_space<vmem>>, vector<1x224x128xbf16>
    %61 = vector.shape_cast %60 : vector<1x224x128xbf16> to vector<224x128xbf16>
    %cst_28 = arith.constant dense<0.000000e+00> : vector<5x128xf32>
    %62 = tpu.matmul %59, %61, %cst_28 {dimension_numbers = #tpu.dot_dimension_numbers<[1], [0], [0], [1], [0, 0, 1, 1], [], []>} : vector<5x224xbf16>, vector<224x128xbf16>, vector<5x128xf32> -> vector<5x128xf32>
    %63 = arith.addf %57, %62 : vector<5x128xf32>
    %64 = vector.extract_strided_slice %63 {offsets = [0, 0], sizes = [1, 128], strides = [1, 1]} : vector<5x128xf32> to vector<1x128xf32>
    %65 = vector.extract_strided_slice %63 {offsets = [1, 0], sizes = [1, 128], strides = [1, 1]} : vector<5x128xf32> to vector<1x128xf32>
    %66 = arith.maximumf %64, %65 : vector<1x128xf32>
    %67 = vector.extract_strided_slice %63 {offsets = [2, 0], sizes = [1, 128], strides = [1, 1]} : vector<5x128xf32> to vector<1x128xf32>
    %68 = vector.extract_strided_slice %63 {offsets = [3, 0], sizes = [1, 128], strides = [1, 1]} : vector<5x128xf32> to vector<1x128xf32>
    %69 = arith.maximumf %67, %68 : vector<1x128xf32>
    %70 = tpu.concatenate %66, %69 in 0 : vector<1x128xf32>, vector<1x128xf32> -> vector<2x128xf32>
    %71 = vector.extract_strided_slice %70 {offsets = [0, 0], sizes = [2, 64], strides = [1, 1]} : vector<2x128xf32> to vector<2x64xf32>
    %72 = vector.extract_strided_slice %70 {offsets = [0, 64], sizes = [2, 64], strides = [1, 1]} : vector<2x128xf32> to vector<2x64xf32>
    %73 = arith.maximumf %71, %72 : vector<2x64xf32>
    %c0_29 = arith.constant 0 : index
    %c0_30 = arith.constant 0 : index
    %74 = vector.load %arg4[%c0_29, %c0_30] : memref<1x64xf32, #tpu.memory_space<vmem>>, vector<1x64xf32>
    %75 = vector.broadcast %74 : vector<1x64xf32> to vector<2x64xf32>
    %76 = arith.addf %73, %75 : vector<2x64xf32>
    %cst_31 = arith.constant 0.000000e+00 : f32
    %77 = vector.broadcast %cst_31 : f32 to vector<2x64xf32>
    %78 = arith.maximumf %76, %77 : vector<2x64xf32>
    %79 = vector.extract_strided_slice %78 {offsets = [0, 0], sizes = [1, 64], strides = [1, 1]} : vector<2x64xf32> to vector<1x64xf32>
    %80 = vector.extract_strided_slice %78 {offsets = [1, 0], sizes = [1, 64], strides = [1, 1]} : vector<2x64xf32> to vector<1x64xf32>
    %81 = tpu.concatenate %79, %80 in 1 : vector<1x64xf32>, vector<1x64xf32> -> vector<1x128xf32>
    %c16 = arith.constant 16 : index
    %c0_32 = arith.constant 0 : index
    %82 = vector.load %arg0[%c16, %c0_32] : memref<32x16xf32, #tpu.memory_space<vmem>>, vector<14x16xf32>
    %83 = arith.truncf %82 : vector<14x16xf32> to vector<14x16xbf16>
    %c0_33 = arith.constant 0 : index
    %c0_34 = arith.constant 0 : index
    %c0_35 = arith.constant 0 : index
    %84 = vector.load %arg1[%c0_33, %c0_34, %c0_35] : memref<3x16x448xbf16, #tpu.memory_space<vmem>>, vector<1x16x448xbf16>
    %85 = vector.shape_cast %84 : vector<1x16x448xbf16> to vector<16x448xbf16>
    %cst_36 = arith.constant dense<0.000000e+00> : vector<14x448xf32>
    %86 = tpu.matmul %83, %85, %cst_36 {dimension_numbers = #tpu.dot_dimension_numbers<[1], [0], [0], [1], [0, 0, 1, 1], [], []>} : vector<14x16xbf16>, vector<16x448xbf16>, vector<14x448xf32> -> vector<14x448xf32>
    %c17 = arith.constant 17 : index
    %c0_37 = arith.constant 0 : index
    %87 = vector.load %arg0[%c17, %c0_37] : memref<32x16xf32, #tpu.memory_space<vmem>>, vector<14x16xf32>
    %88 = arith.truncf %87 : vector<14x16xf32> to vector<14x16xbf16>
    %c1_38 = arith.constant 1 : index
    %c0_39 = arith.constant 0 : index
    %c0_40 = arith.constant 0 : index
    %89 = vector.load %arg1[%c1_38, %c0_39, %c0_40] : memref<3x16x448xbf16, #tpu.memory_space<vmem>>, vector<1x16x448xbf16>
    %90 = vector.shape_cast %89 : vector<1x16x448xbf16> to vector<16x448xbf16>
    %cst_41 = arith.constant dense<0.000000e+00> : vector<14x448xf32>
    %91 = tpu.matmul %88, %90, %cst_41 {dimension_numbers = #tpu.dot_dimension_numbers<[1], [0], [0], [1], [0, 0, 1, 1], [], []>} : vector<14x16xbf16>, vector<16x448xbf16>, vector<14x448xf32> -> vector<14x448xf32>
    %92 = arith.addf %86, %91 : vector<14x448xf32>
    %c18 = arith.constant 18 : index
    %c0_42 = arith.constant 0 : index
    %93 = vector.load %arg0[%c18, %c0_42] : memref<32x16xf32, #tpu.memory_space<vmem>>, vector<14x16xf32>
    %94 = arith.truncf %93 : vector<14x16xf32> to vector<14x16xbf16>
    %c2_43 = arith.constant 2 : index
    %c0_44 = arith.constant 0 : index
    %c0_45 = arith.constant 0 : index
    %95 = vector.load %arg1[%c2_43, %c0_44, %c0_45] : memref<3x16x448xbf16, #tpu.memory_space<vmem>>, vector<1x16x448xbf16>
    %96 = vector.shape_cast %95 : vector<1x16x448xbf16> to vector<16x448xbf16>
    %cst_46 = arith.constant dense<0.000000e+00> : vector<14x448xf32>
    %97 = tpu.matmul %94, %96, %cst_46 {dimension_numbers = #tpu.dot_dimension_numbers<[1], [0], [0], [1], [0, 0, 1, 1], [], []>} : vector<14x16xbf16>, vector<16x448xbf16>, vector<14x448xf32> -> vector<14x448xf32>
    %98 = arith.addf %92, %97 : vector<14x448xf32>
    %99 = vector.extract_strided_slice %98 {offsets = [0, 0], sizes = [14, 224], strides = [1, 1]} : vector<14x448xf32> to vector<14x224xf32>
    %100 = vector.extract_strided_slice %98 {offsets = [0, 224], sizes = [14, 224], strides = [1, 1]} : vector<14x448xf32> to vector<14x224xf32>
    %101 = arith.maximumf %99, %100 : vector<14x224xf32>
    %102 = vector.extract_strided_slice %101 {offsets = [0, 0], sizes = [1, 224], strides = [1, 1]} : vector<14x224xf32> to vector<1x224xf32>
    %103 = vector.extract_strided_slice %101 {offsets = [1, 0], sizes = [1, 224], strides = [1, 1]} : vector<14x224xf32> to vector<1x224xf32>
    %104 = arith.maximumf %102, %103 : vector<1x224xf32>
    %105 = vector.extract_strided_slice %101 {offsets = [2, 0], sizes = [1, 224], strides = [1, 1]} : vector<14x224xf32> to vector<1x224xf32>
    %106 = vector.extract_strided_slice %101 {offsets = [3, 0], sizes = [1, 224], strides = [1, 1]} : vector<14x224xf32> to vector<1x224xf32>
    %107 = arith.maximumf %105, %106 : vector<1x224xf32>
    %108 = vector.extract_strided_slice %101 {offsets = [4, 0], sizes = [1, 224], strides = [1, 1]} : vector<14x224xf32> to vector<1x224xf32>
    %109 = vector.extract_strided_slice %101 {offsets = [5, 0], sizes = [1, 224], strides = [1, 1]} : vector<14x224xf32> to vector<1x224xf32>
    %110 = arith.maximumf %108, %109 : vector<1x224xf32>
    %111 = vector.extract_strided_slice %101 {offsets = [6, 0], sizes = [1, 224], strides = [1, 1]} : vector<14x224xf32> to vector<1x224xf32>
    %112 = vector.extract_strided_slice %101 {offsets = [7, 0], sizes = [1, 224], strides = [1, 1]} : vector<14x224xf32> to vector<1x224xf32>
    %113 = arith.maximumf %111, %112 : vector<1x224xf32>
    %114 = vector.extract_strided_slice %101 {offsets = [8, 0], sizes = [1, 224], strides = [1, 1]} : vector<14x224xf32> to vector<1x224xf32>
    %115 = vector.extract_strided_slice %101 {offsets = [9, 0], sizes = [1, 224], strides = [1, 1]} : vector<14x224xf32> to vector<1x224xf32>
    %116 = arith.maximumf %114, %115 : vector<1x224xf32>
    %117 = vector.extract_strided_slice %101 {offsets = [10, 0], sizes = [1, 224], strides = [1, 1]} : vector<14x224xf32> to vector<1x224xf32>
    %118 = vector.extract_strided_slice %101 {offsets = [11, 0], sizes = [1, 224], strides = [1, 1]} : vector<14x224xf32> to vector<1x224xf32>
    %119 = arith.maximumf %117, %118 : vector<1x224xf32>
    %120 = vector.extract_strided_slice %101 {offsets = [12, 0], sizes = [1, 224], strides = [1, 1]} : vector<14x224xf32> to vector<1x224xf32>
    %121 = vector.extract_strided_slice %101 {offsets = [13, 0], sizes = [1, 224], strides = [1, 1]} : vector<14x224xf32> to vector<1x224xf32>
    %122 = arith.maximumf %120, %121 : vector<1x224xf32>
    %123 = tpu.concatenate %104, %107, %110, %113, %116, %119, %122 in 0 : vector<1x224xf32>, vector<1x224xf32>, vector<1x224xf32>, vector<1x224xf32>, vector<1x224xf32>, vector<1x224xf32>, vector<1x224xf32> -> vector<7x224xf32>
    %c0_47 = arith.constant 0 : index
    %c0_48 = arith.constant 0 : index
    %124 = vector.load %arg2[%c0_47, %c0_48] : memref<1x224xf32, #tpu.memory_space<vmem>>, vector<1x224xf32>
    %125 = vector.broadcast %124 : vector<1x224xf32> to vector<7x224xf32>
    %126 = arith.addf %123, %125 : vector<7x224xf32>
    %cst_49 = arith.constant 0.000000e+00 : f32
    %127 = vector.broadcast %cst_49 : f32 to vector<7x224xf32>
    %128 = arith.maximumf %126, %127 : vector<7x224xf32>
    %129 = vector.extract_strided_slice %128 {offsets = [0, 0], sizes = [5, 224], strides = [1, 1]} : vector<7x224xf32> to vector<5x224xf32>
    %130 = arith.truncf %129 : vector<5x224xf32> to vector<5x224xbf16>
    %c0_50 = arith.constant 0 : index
    %c0_51 = arith.constant 0 : index
    %c0_52 = arith.constant 0 : index
    %131 = vector.load %arg3[%c0_50, %c0_51, %c0_52] : memref<3x224x128xbf16, #tpu.memory_space<vmem>>, vector<1x224x128xbf16>
    %132 = vector.shape_cast %131 : vector<1x224x128xbf16> to vector<224x128xbf16>
    %cst_53 = arith.constant dense<0.000000e+00> : vector<5x128xf32>
    %133 = tpu.matmul %130, %132, %cst_53 {dimension_numbers = #tpu.dot_dimension_numbers<[1], [0], [0], [1], [0, 0, 1, 1], [], []>} : vector<5x224xbf16>, vector<224x128xbf16>, vector<5x128xf32> -> vector<5x128xf32>
    %134 = vector.extract_strided_slice %128 {offsets = [1, 0], sizes = [5, 224], strides = [1, 1]} : vector<7x224xf32> to vector<5x224xf32>
    %135 = arith.truncf %134 : vector<5x224xf32> to vector<5x224xbf16>
    %c1_54 = arith.constant 1 : index
    %c0_55 = arith.constant 0 : index
    %c0_56 = arith.constant 0 : index
    %136 = vector.load %arg3[%c1_54, %c0_55, %c0_56] : memref<3x224x128xbf16, #tpu.memory_space<vmem>>, vector<1x224x128xbf16>
    %137 = vector.shape_cast %136 : vector<1x224x128xbf16> to vector<224x128xbf16>
    %cst_57 = arith.constant dense<0.000000e+00> : vector<5x128xf32>
    %138 = tpu.matmul %135, %137, %cst_57 {dimension_numbers = #tpu.dot_dimension_numbers<[1], [0], [0], [1], [0, 0, 1, 1], [], []>} : vector<5x224xbf16>, vector<224x128xbf16>, vector<5x128xf32> -> vector<5x128xf32>
    %139 = arith.addf %133, %138 : vector<5x128xf32>
    %140 = vector.extract_strided_slice %128 {offsets = [2, 0], sizes = [5, 224], strides = [1, 1]} : vector<7x224xf32> to vector<5x224xf32>
    %141 = arith.truncf %140 : vector<5x224xf32> to vector<5x224xbf16>
    %c2_58 = arith.constant 2 : index
    %c0_59 = arith.constant 0 : index
    %c0_60 = arith.constant 0 : index
    %142 = vector.load %arg3[%c2_58, %c0_59, %c0_60] : memref<3x224x128xbf16, #tpu.memory_space<vmem>>, vector<1x224x128xbf16>
    %143 = vector.shape_cast %142 : vector<1x224x128xbf16> to vector<224x128xbf16>
    %cst_61 = arith.constant dense<0.000000e+00> : vector<5x128xf32>
    %144 = tpu.matmul %141, %143, %cst_61 {dimension_numbers = #tpu.dot_dimension_numbers<[1], [0], [0], [1], [0, 0, 1, 1], [], []>} : vector<5x224xbf16>, vector<224x128xbf16>, vector<5x128xf32> -> vector<5x128xf32>
    %145 = arith.addf %139, %144 : vector<5x128xf32>
    %146 = vector.extract_strided_slice %145 {offsets = [0, 0], sizes = [1, 128], strides = [1, 1]} : vector<5x128xf32> to vector<1x128xf32>
    %147 = vector.extract_strided_slice %145 {offsets = [1, 0], sizes = [1, 128], strides = [1, 1]} : vector<5x128xf32> to vector<1x128xf32>
    %148 = arith.maximumf %146, %147 : vector<1x128xf32>
    %149 = vector.extract_strided_slice %145 {offsets = [2, 0], sizes = [1, 128], strides = [1, 1]} : vector<5x128xf32> to vector<1x128xf32>
    %150 = vector.extract_strided_slice %145 {offsets = [3, 0], sizes = [1, 128], strides = [1, 1]} : vector<5x128xf32> to vector<1x128xf32>
    %151 = arith.maximumf %149, %150 : vector<1x128xf32>
    %152 = tpu.concatenate %148, %151 in 0 : vector<1x128xf32>, vector<1x128xf32> -> vector<2x128xf32>
    %153 = vector.extract_strided_slice %152 {offsets = [0, 0], sizes = [2, 64], strides = [1, 1]} : vector<2x128xf32> to vector<2x64xf32>
    %154 = vector.extract_strided_slice %152 {offsets = [0, 64], sizes = [2, 64], strides = [1, 1]} : vector<2x128xf32> to vector<2x64xf32>
    %155 = arith.maximumf %153, %154 : vector<2x64xf32>
    %c0_62 = arith.constant 0 : index
    %c0_63 = arith.constant 0 : index
    %156 = vector.load %arg4[%c0_62, %c0_63] : memref<1x64xf32, #tpu.memory_space<vmem>>, vector<1x64xf32>
    %157 = vector.broadcast %156 : vector<1x64xf32> to vector<2x64xf32>
    %158 = arith.addf %155, %157 : vector<2x64xf32>
    %cst_64 = arith.constant 0.000000e+00 : f32
    %159 = vector.broadcast %cst_64 : f32 to vector<2x64xf32>
    %160 = arith.maximumf %158, %159 : vector<2x64xf32>
    %161 = vector.extract_strided_slice %160 {offsets = [0, 0], sizes = [1, 64], strides = [1, 1]} : vector<2x64xf32> to vector<1x64xf32>
    %162 = vector.extract_strided_slice %160 {offsets = [1, 0], sizes = [1, 64], strides = [1, 1]} : vector<2x64xf32> to vector<1x64xf32>
    %163 = tpu.concatenate %161, %162 in 1 : vector<1x64xf32>, vector<1x64xf32> -> vector<1x128xf32>
    %164 = tpu.concatenate %81, %163 in 0 : vector<1x128xf32>, vector<1x128xf32> -> vector<2x128xf32>
    %165 = arith.truncf %164 : vector<2x128xf32> to vector<2x128xbf16>
    %c0_65 = arith.constant 0 : index
    %c0_66 = arith.constant 0 : index
    %166 = vector.load %arg5[%c0_65, %c0_66] : memref<128x64xbf16, #tpu.memory_space<vmem>>, vector<128x64xbf16>
    %cst_67 = arith.constant dense<0.000000e+00> : vector<2x64xf32>
    %167 = tpu.matmul %165, %166, %cst_67 {dimension_numbers = #tpu.dot_dimension_numbers<[1], [0], [0], [1], [0, 0, 1, 1], [], []>} : vector<2x128xbf16>, vector<128x64xbf16>, vector<2x64xf32> -> vector<2x64xf32>
    %c0_68 = arith.constant 0 : index
    %c0_69 = arith.constant 0 : index
    %168 = vector.load %arg6[%c0_68, %c0_69] : memref<1x64xf32, #tpu.memory_space<vmem>>, vector<1x64xf32>
    %169 = vector.broadcast %168 : vector<1x64xf32> to vector<2x64xf32>
    %170 = arith.addf %167, %169 : vector<2x64xf32>
    %cst_70 = arith.constant 0.000000e+00 : f32
    %171 = vector.broadcast %cst_70 : f32 to vector<2x64xf32>
    %172 = arith.maximumf %170, %171 : vector<2x64xf32>
    %173 = arith.truncf %172 : vector<2x64xf32> to vector<2x64xbf16>
    %c0_71 = arith.constant 0 : index
    %c0_72 = arith.constant 0 : index
    %174 = vector.load %arg7[%c0_71, %c0_72] : memref<64x100xbf16, #tpu.memory_space<vmem>>, vector<64x100xbf16>
    %cst_73 = arith.constant dense<0.000000e+00> : vector<2x100xf32>
    %175 = tpu.matmul %173, %174, %cst_73 {dimension_numbers = #tpu.dot_dimension_numbers<[1], [0], [0], [1], [0, 0, 1, 1], [], []>} : vector<2x64xbf16>, vector<64x100xbf16>, vector<2x100xf32> -> vector<2x100xf32>
    %c0_74 = arith.constant 0 : index
    %c0_75 = arith.constant 0 : index
    %176 = vector.load %arg8[%c0_74, %c0_75] : memref<1x100xf32, #tpu.memory_space<vmem>>, vector<1x100xf32>
    %177 = vector.broadcast %176 : vector<1x100xf32> to vector<2x100xf32>
    %178 = arith.addf %175, %177 : vector<2x100xf32>
    %cst_76 = arith.constant 0.000000e+00 : f32
    %179 = vector.broadcast %cst_76 : f32 to vector<2x100xf32>
    %180 = arith.maximumf %178, %179 : vector<2x100xf32>
    %181 = arith.truncf %180 : vector<2x100xf32> to vector<2x100xbf16>
    %c0_77 = arith.constant 0 : index
    %c0_78 = arith.constant 0 : index
    %182 = vector.load %arg9[%c0_77, %c0_78] : memref<100x10xbf16, #tpu.memory_space<vmem>>, vector<100x10xbf16>
    %cst_79 = arith.constant dense<0.000000e+00> : vector<2x10xf32>
    %183 = tpu.matmul %181, %182, %cst_79 {dimension_numbers = #tpu.dot_dimension_numbers<[1], [0], [0], [1], [0, 0, 1, 1], [], []>} : vector<2x100xbf16>, vector<100x10xbf16>, vector<2x10xf32> -> vector<2x10xf32>
    %c0_80 = arith.constant 0 : index
    %c0_81 = arith.constant 0 : index
    %184 = vector.load %arg10[%c0_80, %c0_81] : memref<1x10xf32, #tpu.memory_space<vmem>>, vector<1x10xf32>
    %185 = vector.broadcast %184 : vector<1x10xf32> to vector<2x10xf32>
    %186 = arith.addf %183, %185 : vector<2x10xf32>
    %c0_82 = arith.constant 0 : index
    %c0_83 = arith.constant 0 : index
    %187 = vector.load %arg11[%c0_82, %c0_83] : memref<2x10xf32, #tpu.memory_space<vmem>>, vector<2x10xf32>
    tpu.vector_store %arg11[%c0_82, %c0_83], %186 {strides = array<i32>} : memref<2x10xf32, #tpu.memory_space<vmem>>, vector<2x10xf32>,
    %cst_84 = arith.constant dense<0xFF800000> : vector<2xf32>
    %188 = vector.multi_reduction <maximumf>, %186, %cst_84 [1] : vector<2x10xf32> to vector<2xf32>
    %189 = vector.shape_cast %188 : vector<2xf32> to vector<2x1xf32>
    %190 = tpu.iota {dimensions = array<i32: 1>} : vector<2x10xi32>
    %191 = vector.broadcast %189 : vector<2x1xf32> to vector<2x10xf32>
    %192 = arith.cmpf oeq, %186, %191 : vector<2x10xf32>
    %c10_i32 = arith.constant 10 : i32
    %193 = vector.broadcast %c10_i32 : i32 to vector<2x10xi32>
    %194 = arith.select %192, %190, %193 : vector<2x10xi1>, vector<2x10xi32>
    %cst_85 = arith.constant dense<2147483647> : vector<2xi32>
    %195 = vector.multi_reduction <minsi>, %194, %cst_85 [1] : vector<2x10xi32> to vector<2xi32>
    %196 = vector.shape_cast %195 : vector<2xi32> to vector<2x1xi32>
    %c0_86 = arith.constant 0 : index
    %c0_87 = arith.constant 0 : index
    %197 = vector.load %arg12[%c0_86, %c0_87] : memref<2x1xi32, #tpu.memory_space<vmem>>, vector<2x1xi32>
    tpu.vector_store %arg12[%c0_86, %c0_87], %196 {strides = array<i32>} : memref<2x1xi32, #tpu.memory_space<vmem>>, vector<2x1xi32>,
    return
  }
}

</mosaic_0001>

<llo_original>
// kernel: digit_classifier_forward.1
$region0: #{digit_classifier_forward.1}
  #allocation0 [shape = 'u32[]', space=smem, size = 0x4, offset = 0x4, fixed_abs, tag = 'smem constant byte address 0x4 - core index']
  #allocation1 [shape = 'u32[72,128]{1,0:T(1,128)}', space=vmem, size = 0x9000, scoped, tag = 'internal scratch']
  %s0 = inlined_call_operand.hbm [shape: f32[32,16], index: 0, kind: input, shape index: {}]
  %s1 = inlined_call_operand.vmem [shape: bf16[3,16,448], index: 1, kind: input, shape index: {}]
  %s2 = inlined_call_operand.vmem [shape: f32[1,224], index: 2, kind: input, shape index: {}]
  %s3 = inlined_call_operand.hbm [shape: bf16[3,224,128], index: 3, kind: input, shape index: {}]
  %s4 = inlined_call_operand.vmem [shape: f32[1,64], index: 4, kind: input, shape index: {}]
  %s5 = inlined_call_operand.vmem [shape: bf16[128,64], index: 5, kind: input, shape index: {}]
  %s6 = inlined_call_operand.vmem [shape: f32[1,64], index: 6, kind: input, shape index: {}]
  %s7 = inlined_call_operand.hbm [shape: bf16[64,100], index: 7, kind: input, shape index: {}]
  %s8 = inlined_call_operand.vmem [shape: f32[1,100], index: 8, kind: input, shape index: {}]
  %s9 = inlined_call_operand.vmem [shape: bf16[100,10], index: 9, kind: input, shape index: {}]
  %s10 = inlined_call_operand.vmem [shape: f32[1,10], index: 10, kind: input, shape index: {}]
  %s11 = inlined_call_operand.hbm [shape: f32[2,10], index: 11, kind: output, shape index: {0}]
  %s12 = inlined_call_operand.vmem [shape: s32[2,1], index: 12, kind: output, shape index: {1}]
  %13 = xla_tuple %s11, %s12
  %s14 = sld [smem:[#allocation0]]
  $region74: #{digit_classifier_forward.1} parent=0
    _
  %s16 = ssub.s32 1, %s14
  %s17 = scalar_select 0, %s16, %s14
  $region1: #{digit_classifier_forward.1} parent=0
    #allocation2 [shape = 'u8[16384]{0}', space=vmem, size = 0x4000, scoped, tag = 'input window, operand 0, single buffered']
    #allocation3 [shape = 's32[1]{0}', space=sflag, size = 0x4, scoped, tag = 'scoped memory for digit_classifier_forward.1']
    #allocation4 [shape = 's32[1]{0}', space=sflag, size = 0x4, scoped, tag = 'scoped memory for digit_classifier_forward.1']
    #allocation5 [shape = 'u8[172032]{0}', space=vmem, size = 0x2a000, scoped, tag = 'input window, operand 3, single buffered']
    #allocation6 [shape = 's32[1]{0}', space=sflag, size = 0x4, scoped, tag = 'scoped memory for digit_classifier_forward.1']
    #allocation7 [shape = 'u8[16384]{0}', space=vmem, size = 0x4000, scoped, tag = 'input window, operand 7, single buffered']
    #allocation8 [shape = 'u8[1024]{0}', space=vmem, size = 0x400, scoped, tag = 'output window, operand 0, single buffered']
    %18 = vsyncpa [#allocation3], 0
    %19 = vsyncpa [#allocation6], 0
    %20 = vsyncpa [#allocation4], 0
    // Predicated region
    $region2: #{digit_classifier_forward.1} parent=1 // pred_check
      _
    $region3: #{digit_classifier_forward.1} parent=1 // pred_check_branch
      %22 = sbr.rel (0) target = $region5
    $region4: #{digit_classifier_forward.1} parent=1 // pred_region
      %24 = vsyncadd [#allocation3], 0
      %s25 = sshll.u32 %s0, 4
      %s26 = int_to_ptr.hbm [resolvable:$true] %s25
      %s27 = sshll.u32 [#allocation2], 4
      %s28 = int_to_ptr.vmem [resolvable:$true] %s27
      %33 = dma.hbm_to_vmem [thread:$0]  %s26, 512, %s28, [#allocation3], 128, 128, 8
    $region5: #{digit_classifier_forward.1} parent=1 // pred_fallthru
      _
    // Predicated region
    $region6: #{digit_classifier_forward.1} parent=1 // pred_check
      _
    $region7: #{digit_classifier_forward.1} parent=1 // pred_check_branch
      %35 = sbr.rel (0) target = $region9
    $region8: #{digit_classifier_forward.1} parent=1 // pred_region
      _
    $region9: #{digit_classifier_forward.1} parent=1 // pred_fallthru
      _
    // Predicated region
    $region10: #{digit_classifier_forward.1} parent=1 // pred_check
      _
    $region11: #{digit_classifier_forward.1} parent=1 // pred_check_branch
      %37 = sbr.rel (0) target = $region13
    $region12: #{digit_classifier_forward.1} parent=1 // pred_region
      _
    $region13: #{digit_classifier_forward.1} parent=1 // pred_fallthru
      _
    // Predicated region
    $region14: #{digit_classifier_forward.1} parent=1 // pred_check
      _
    $region15: #{digit_classifier_forward.1} parent=1 // pred_check_branch
      %39 = sbr.rel (0) target = $region17
    $region16: #{digit_classifier_forward.1} parent=1 // pred_region
      %41 = vsyncadd [#allocation6], 0
      %s42 = sshll.u32 %s3, 4
      %s43 = int_to_ptr.hbm [resolvable:$true] %s42
      %s44 = sshll.u32 [#allocation5], 4
      %s45 = int_to_ptr.vmem [resolvable:$true] %s44
      %50 = dma.hbm_to_vmem [thread:$0]  %s43, 5376, %s45, [#allocation6], 64, 64, 4
    $region17: #{digit_classifier_forward.1} parent=1 // pred_fallthru
      _
    // Predicated region
    $region18: #{digit_classifier_forward.1} parent=1 // pred_check
      _
    $region19: #{digit_classifier_forward.1} parent=1 // pred_check_branch
      %52 = sbr.rel (0) target = $region21
    $region20: #{digit_classifier_forward.1} parent=1 // pred_region
      _
    $region21: #{digit_classifier_forward.1} parent=1 // pred_fallthru
      _
    // Predicated region
    $region22: #{digit_classifier_forward.1} parent=1 // pred_check
      _
    $region23: #{digit_classifier_forward.1} parent=1 // pred_check_branch
      %54 = sbr.rel (0) target = $region25
    $region24: #{digit_classifier_forward.1} parent=1 // pred_region
      _
    $region25: #{digit_classifier_forward.1} parent=1 // pred_fallthru
      _
    // Predicated region
    $region26: #{digit_classifier_forward.1} parent=1 // pred_check
      _
    $region27: #{digit_classifier_forward.1} parent=1 // pred_check_branch
      %56 = sbr.rel (0) target = $region29
    $region28: #{digit_classifier_forward.1} parent=1 // pred_region
      _
    $region29: #{digit_classifier_forward.1} parent=1 // pred_fallthru
      _
    // Predicated region
    $region30: #{digit_classifier_forward.1} parent=1 // pred_check
      _
    $region31: #{digit_classifier_forward.1} parent=1 // pred_check_branch
      %58 = sbr.rel (0) target = $region33
    $region32: #{digit_classifier_forward.1} parent=1 // pred_region
      %60 = vsyncadd [#allocation6], 0
      %s61 = sshll.u32 %s7, 4
      %s62 = int_to_ptr.hbm [resolvable:$true] %s61
      %s63 = sshll.u32 [#allocation7], 4
      %s64 = int_to_ptr.vmem [resolvable:$true] %s63
      %69 = dma.hbm_to_vmem [thread:$0]  %s62, 512, %s64, [#allocation6], 64, 64, 4
    $region33: #{digit_classifier_forward.1} parent=1 // pred_fallthru
      _
    // Predicated region
    $region34: #{digit_classifier_forward.1} parent=1 // pred_check
      _
    $region35: #{digit_classifier_forward.1} parent=1 // pred_check_branch
      %71 = sbr.rel (0) target = $region37
    $region36: #{digit_classifier_forward.1} parent=1 // pred_region
      _
    $region37: #{digit_classifier_forward.1} parent=1 // pred_fallthru
      _
    // Predicated region
    $region38: #{digit_classifier_forward.1} parent=1 // pred_check
      _
    $region39: #{digit_classifier_forward.1} parent=1 // pred_check_branch
      %73 = sbr.rel (0) target = $region41
    $region40: #{digit_classifier_forward.1} parent=1 // pred_region
      _
    $region41: #{digit_classifier_forward.1} parent=1 // pred_fallthru
      _
    // Predicated region
    $region42: #{digit_classifier_forward.1} parent=1 // pred_check
      _
    $region43: #{digit_classifier_forward.1} parent=1 // pred_check_branch
      %75 = sbr.rel (0) target = $region45
    $region44: #{digit_classifier_forward.1} parent=1 // pred_region
      _
    $region45: #{digit_classifier_forward.1} parent=1 // pred_fallthru
      _
    // Predicated region
    $region46: #{digit_classifier_forward.1} parent=1 // pred_check
      _
    $region47: #{digit_classifier_forward.1} parent=1 // pred_check_branch
      %77 = sbr.rel (0) target = $region49
    $region48: #{digit_classifier_forward.1} parent=1 // pred_region
      %79 = dma.done [#allocation3], 512
    $region49: #{digit_classifier_forward.1} parent=1 // pred_fallthru
      _
    // Predicated region
    $region50: #{digit_classifier_forward.1} parent=1 // pred_check
      _
    $region51: #{digit_classifier_forward.1} parent=1 // pred_check_branch
      %81 = sbr.rel (0) target = $region53
    $region52: #{digit_classifier_forward.1} parent=1 // pred_region
      %83 = dma.done [#allocation6], 5376
    $region53: #{digit_classifier_forward.1} parent=1 // pred_fallthru
      _
    // Predicated region
    $region54: #{digit_classifier_forward.1} parent=1 // pred_check
      _
    $region55: #{digit_classifier_forward.1} parent=1 // pred_check_branch
      %85 = sbr.rel (0) target = $region57
    $region56: #{digit_classifier_forward.1} parent=1 // pred_region
      %87 = dma.done [#allocation6], 512
    $region57: #{digit_classifier_forward.1} parent=1 // pred_fallthru
      _
    %v89 = vld [vmem:[#allocation2] sm:$0xff]
    %v90 = vld [vmem:[#allocation2 + $0x8] sm:$0x3f]
    %v91 = vpack.c.bf16 %v90, %v89
    %v92 = vld [vmem:[%s1] sm:$0xff]
    %v93 = vld [vmem:[%s1 + $0x8] sm:$0xff]
    %v94 = vld [vmem:[%s1 + $0x10] sm:$0xff]
    %v95 = vld [vmem:[%s1 + $0x18] sm:$0xff]
    %v96 = vld [vmem:[#allocation2 + $0x1] sm:$0xff]
    %v97 = vld [vmem:[#allocation2 + $0x9] sm:$0x3f]
    %v98 = vpack.c.bf16 %v97, %v96
    %s99 = scalar_lea.vmem %s1, 32
    %v100 = vld [vmem:[%s99] sm:$0xff]
    %v101 = vld [vmem:[%s99 + $0x8] sm:$0xff]
    %v102 = vld [vmem:[%s99 + $0x10] sm:$0xff]
    %v103 = vld [vmem:[%s99 + $0x18] sm:$0xff]
    %v108 = vunpack.c.l.b16 %v100
    %v109 = vunpack.c.h.b16 %v100
    %v110 = vunpack.c.l.b16 %v101
    %v111 = vunpack.c.h.b16 %v101
    %v112 = vunpack.c.l.b16 %v102
    %v113 = vunpack.c.h.b16 %v102
    %v114 = vunpack.c.l.b16 %v103
    %v115 = vunpack.c.h.b16 %v103
    %v116 = vpack.c.b16 %v112, %v108
    %v117 = vpack.c.b16 %v113, %v109
    %v118 = vpack.c.b16 %v114, %v110
    %v119 = vpack.c.b16 %v115, %v111
    %vm124 = vcmask 130048
    %v126 = vsel %vm124, %v98, 0
    %128 = vmatpush.bf16.msra.mxu0 0
    %129 = vmatpush.bf16.msra.mxu0 0
    %130 = vmatpush.bf16.msra.mxu0 0
    %131 = vmatpush.bf16.msra.mxu0 0
    %132 = vmatpush.bf16.msra.mxu0 0
    %133 = vmatpush.bf16.msra.mxu0 0
    %134 = vmatpush.bf16.msra.mxu0 0
    %135 = vmatpush.bf16.msra.mxu0 %v116
    %136 = vmatmul.bf16.gmra.mxu0 %v126
    %v137 = vpop.f32.mrf.mxu0
    %v138 = vadd.f32 0.0, %v137
    %v139 = vpop.f32.mrf.mxu0
    %v140 = vadd.f32 0.0, %v139
    %141 = vdwg.mxu0
    %142 = vmatpush.bf16.msra.mxu0 0
    %143 = vmatpush.bf16.msra.mxu0 0
    %144 = vmatpush.bf16.msra.mxu0 0
    %145 = vmatpush.bf16.msra.mxu0 0
    %146 = vmatpush.bf16.msra.mxu0 0
    %147 = vmatpush.bf16.msra.mxu0 0
    %148 = vmatpush.bf16.msra.mxu0 0
    %149 = vmatpush.bf16.msra.mxu0 %v117
    %150 = vmatmul.bf16.gmra.mxu0 %v126
    %v151 = vpop.f32.mrf.mxu0
    %v152 = vadd.f32 0.0, %v151
    %v153 = vpop.f32.mrf.mxu0
    %v154 = vadd.f32 0.0, %v153
    %155 = vdwg.mxu0
    %156 = vmatpush.bf16.msra.mxu0 0
    %157 = vmatpush.bf16.msra.mxu0 0
    %158 = vmatpush.bf16.msra.mxu0 0
    %159 = vmatpush.bf16.msra.mxu0 0
    %160 = vmatpush.bf16.msra.mxu0 0
    %161 = vmatpush.bf16.msra.mxu0 0
    %162 = vmatpush.bf16.msra.mxu0 0
    %163 = vmatpush.bf16.msra.mxu0 %v118
    %164 = vmatmul.bf16.gmra.mxu0 %v126
    %v165 = vpop.f32.mrf.mxu0
    %v166 = vadd.f32 0.0, %v165
    %v167 = vpop.f32.mrf.mxu0
    %v168 = vadd.f32 0.0, %v167
    %169 = vdwg.mxu0
    %170 = vmatpush.bf16.msra.mxu0 0
    %171 = vmatpush.bf16.msra.mxu0 0
    %172 = vmatpush.bf16.msra.mxu0 0
    %173 = vmatpush.bf16.msra.mxu0 0
    %174 = vmatpush.bf16.msra.mxu0 0
    %175 = vmatpush.bf16.msra.mxu0 0
    %176 = vmatpush.bf16.msra.mxu0 0
    %177 = vmatpush.bf16.msra.mxu0 %v119
    %178 = vmatmul.bf16.gmra.mxu0 %v126
    %v179 = vpop.f32.mrf.mxu0
    %v180 = vadd.f32 0.0, %v179
    %v181 = vpop.f32.mrf.mxu0
    %v182 = vadd.f32 0.0, %v181
    %183 = vdwg.mxu0
    %v188 = vunpack.c.l.b16 %v92
    %v189 = vunpack.c.h.b16 %v92
    %v190 = vunpack.c.l.b16 %v93
    %v191 = vunpack.c.h.b16 %v93
    %v192 = vunpack.c.l.b16 %v94
    %v193 = vunpack.c.h.b16 %v94
    %v194 = vunpack.c.l.b16 %v95
    %v195 = vunpack.c.h.b16 %v95
    %v196 = vpack.c.b16 %v192, %v188
    %v197 = vpack.c.b16 %v193, %v189
    %v198 = vpack.c.b16 %v194, %v190
    %v199 = vpack.c.b16 %v195, %v191
    %v205 = vsel %vm124, %v91, 0
    %207 = vmatpush.bf16.msra.mxu0 0
    %208 = vmatpush.bf16.msra.mxu0 0
    %209 = vmatpush.bf16.msra.mxu0 0
    %210 = vmatpush.bf16.msra.mxu0 0
    %211 = vmatpush.bf16.msra.mxu0 0
    %212 = vmatpush.bf16.msra.mxu0 0
    %213 = vmatpush.bf16.msra.mxu0 0
    %214 = vmatpush.bf16.msra.mxu0 %v196
    %215 = vmatmul.bf16.gmra.mxu0 %v205
    %v216 = vpop.f32.mrf.mxu0
    %v217 = vadd.f32 %v138, %v216
    %v218 = vpop.f32.mrf.mxu0
    %v219 = vadd.f32 %v140, %v218
    %220 = vdwg.mxu0
    %221 = vmatpush.bf16.msra.mxu0 0
    %222 = vmatpush.bf16.msra.mxu0 0
    %223 = vmatpush.bf16.msra.mxu0 0
    %224 = vmatpush.bf16.msra.mxu0 0
    %225 = vmatpush.bf16.msra.mxu0 0
    %226 = vmatpush.bf16.msra.mxu0 0
    %227 = vmatpush.bf16.msra.mxu0 0
    %228 = vmatpush.bf16.msra.mxu0 %v197
    %229 = vmatmul.bf16.gmra.mxu0 %v205
    %v230 = vpop.f32.mrf.mxu0
    %v231 = vadd.f32 %v152, %v230
    %v232 = vpop.f32.mrf.mxu0
    %v233 = vadd.f32 %v154, %v232
    %234 = vdwg.mxu0
    %235 = vmatpush.bf16.msra.mxu0 0
    %236 = vmatpush.bf16.msra.mxu0 0
    %237 = vmatpush.bf16.msra.mxu0 0
    %238 = vmatpush.bf16.msra.mxu0 0
    %239 = vmatpush.bf16.msra.mxu0 0
    %240 = vmatpush.bf16.msra.mxu0 0
    %241 = vmatpush.bf16.msra.mxu0 0
    %242 = vmatpush.bf16.msra.mxu0 %v198
    %243 = vmatmul.bf16.gmra.mxu0 %v205
    %v244 = vpop.f32.mrf.mxu0
    %v245 = vadd.f32 %v166, %v244
    %v246 = vpop.f32.mrf.mxu0
    %v247 = vadd.f32 %v168, %v246
    %248 = vdwg.mxu0
    %249 = vmatpush.bf16.msra.mxu0 0
    %250 = vmatpush.bf16.msra.mxu0 0
    %251 = vmatpush.bf16.msra.mxu0 0
    %252 = vmatpush.bf16.msra.mxu0 0
    %253 = vmatpush.bf16.msra.mxu0 0
    %254 = vmatpush.bf16.msra.mxu0 0
    %255 = vmatpush.bf16.msra.mxu0 0
    %256 = vmatpush.bf16.msra.mxu0 %v199
    %257 = vmatmul.bf16.gmra.mxu0 %v205
    %v258 = vpop.f32.mrf.mxu0
    %v259 = vadd.f32 %v180, %v258
    %v260 = vpop.f32.mrf.mxu0
    %v261 = vadd.f32 %v182, %v260
    %262 = vdwg.mxu0
    %v263 = vld [vmem:[#allocation2 + $0x2] sm:$0xff]
    %v264 = vld [vmem:[#allocation2 + $0xa] sm:$0x3f]
    %v265 = vpack.c.bf16 %v264, %v263
    %s266 = scalar_lea.vmem %s1, 64
    %v267 = vld [vmem:[%s266] sm:$0xff]
    %v268 = vld [vmem:[%s266 + $0x8] sm:$0xff]
    %v269 = vld [vmem:[%s266 + $0x10] sm:$0xff]
    %v270 = vld [vmem:[%s266 + $0x18] sm:$0xff]
    %v275 = vunpack.c.l.b16 %v267
    %v276 = vunpack.c.h.b16 %v267
    %v277 = vunpack.c.l.b16 %v268
    %v278 = vunpack.c.h.b16 %v268
    %v279 = vunpack.c.l.b16 %v269
    %v280 = vunpack.c.h.b16 %v269
    %v281 = vunpack.c.l.b16 %v270
    %v282 = vunpack.c.h.b16 %v270
    %v283 = vpack.c.b16 %v279, %v275
    %v284 = vpack.c.b16 %v280, %v276
    %v285 = vpack.c.b16 %v281, %v277
    %v286 = vpack.c.b16 %v282, %v278
    %v292 = vsel %vm124, %v265, 0
    %294 = vmatpush.bf16.msra.mxu0 0
    %295 = vmatpush.bf16.msra.mxu0 0
    %296 = vmatpush.bf16.msra.mxu0 0
    %297 = vmatpush.bf16.msra.mxu0 0
    %298 = vmatpush.bf16.msra.mxu0 0
    %299 = vmatpush.bf16.msra.mxu0 0
    %300 = vmatpush.bf16.msra.mxu0 0
    %301 = vmatpush.bf16.msra.mxu0 %v283
    %302 = vmatmul.bf16.gmra.mxu0 %v292
    %v303 = vpop.f32.mrf.mxu0
    %v304 = vadd.f32 0.0, %v303
    %v305 = vpop.f32.mrf.mxu0
    %v306 = vadd.f32 0.0, %v305
    %307 = vdwg.mxu0
    %308 = vmatpush.bf16.msra.mxu0 0
    %309 = vmatpush.bf16.msra.mxu0 0
    %310 = vmatpush.bf16.msra.mxu0 0
    %311 = vmatpush.bf16.msra.mxu0 0
    %312 = vmatpush.bf16.msra.mxu0 0
    %313 = vmatpush.bf16.msra.mxu0 0
    %314 = vmatpush.bf16.msra.mxu0 0
    %315 = vmatpush.bf16.msra.mxu0 %v284
    %316 = vmatmul.bf16.gmra.mxu0 %v292
    %v317 = vpop.f32.mrf.mxu0
    %v318 = vadd.f32 0.0, %v317
    %v319 = vpop.f32.mrf.mxu0
    %v320 = vadd.f32 0.0, %v319
    %321 = vdwg.mxu0
    %322 = vmatpush.bf16.msra.mxu0 0
    %323 = vmatpush.bf16.msra.mxu0 0
    %324 = vmatpush.bf16.msra.mxu0 0
    %325 = vmatpush.bf16.msra.mxu0 0
    %326 = vmatpush.bf16.msra.mxu0 0
    %327 = vmatpush.bf16.msra.mxu0 0
    %328 = vmatpush.bf16.msra.mxu0 0
    %329 = vmatpush.bf16.msra.mxu0 %v285
    %330 = vmatmul.bf16.gmra.mxu0 %v292
    %v331 = vpop.f32.mrf.mxu0
    %v332 = vadd.f32 0.0, %v331
    %v333 = vpop.f32.mrf.mxu0
    %v334 = vadd.f32 0.0, %v333
    %335 = vdwg.mxu0
    %336 = vmatpush.bf16.msra.mxu0 0
    %337 = vmatpush.bf16.msra.mxu0 0
    %338 = vmatpush.bf16.msra.mxu0 0
    %339 = vmatpush.bf16.msra.mxu0 0
    %340 = vmatpush.bf16.msra.mxu0 0
    %341 = vmatpush.bf16.msra.mxu0 0
    %342 = vmatpush.bf16.msra.mxu0 0
    %343 = vmatpush.bf16.msra.mxu0 %v286
    %344 = vmatmul.bf16.gmra.mxu0 %v292
    %v345 = vpop.f32.mrf.mxu0
    %v346 = vadd.f32 0.0, %v345
    %v347 = vpop.f32.mrf.mxu0
    %v348 = vadd.f32 0.0, %v347
    %349 = vdwg.mxu0
    %v350 = vadd.f32 %v217, %v304
    %v351 = vadd.f32 %v231, %v318
    %v352 = vadd.f32 %v245, %v332
    %v353 = vadd.f32 %v259, %v346
    %v354 = vadd.f32 %v219, %v306
    %v355 = vadd.f32 %v233, %v320
    %v356 = vadd.f32 %v247, %v334
    %v357 = vadd.f32 %v261, %v348
    %364 = vrot.lane.b32.xlu0 %v351, 32
    %v365 = vpop.permute.xlu0 %364
    %366 = vrot.lane.b32.xlu0 %v352, 32
    %v367 = vpop.permute.xlu0 %366
    %368 = vrot.lane.b32.xlu0 %v353, 32
    %v369 = vpop.permute.xlu0 %368
    %370 = vrot.lane.b32.xlu0 %v355, 32
    %v371 = vpop.permute.xlu0 %370
    %372 = vrot.lane.b32.xlu0 %v356, 32
    %v373 = vpop.permute.xlu0 %372
    %374 = vrot.lane.b32.xlu0 %v357, 32
    %v375 = vpop.permute.xlu0 %374
    %vm376 = vcmask 261120
    %v377 = vsel %vm376, %v365, %v367
    %v378 = vsel %vm376, %v367, %v369
    %v379 = vsel %vm376, %v371, %v373
    %v380 = vsel %vm376, %v373, %v375
    %v385 = vmax.f32 %v350, %v377
    %v386 = vmax.f32 %v351, %v378
    %v387 = vmax.f32 %v354, %v379
    %v388 = vmax.f32 %v355, %v380
    %v391 = vrot.slane %v385, 1
    %v392 = vrot.slane %v386, 1
    %v395 = vmax.f32 %v385, %v391
    %v396 = vmax.f32 %v386, %v392
    %v399 = vrot.slane %v387, 1
    %v400 = vrot.slane %v388, 1
    %v403 = vmax.f32 %v387, %v399
    %v404 = vmax.f32 %v388, %v400
    %v407 = vrot.slane %v395, 1
    %v408 = vrot.slane %v396, 1
    %v411 = vrot.slane %v395, 2
    %v412 = vrot.slane %v396, 2
    %v415 = vrot.slane %v395, 3
    %v416 = vrot.slane %v396, 3
    %v421 = vrot.slane %v403, 4
    %v422 = vrot.slane %v404, 4
    %v425 = vrot.slane %v403, 5
    %v426 = vrot.slane %v404, 5
    %v429 = vrot.slane %v403, 6
    %v430 = vrot.slane %v404, 6
    %vm433 = vcmask 1040384
    %v434 = vsel %vm433, %v395, %v407
    %v435 = vsel %vm433, %v396, %v408
    %vm436 = vcmask 1041408
    %v437 = vsel %vm436, %v434, %v411
    %v438 = vsel %vm436, %v435, %v412
    %vm439 = vcmask 1042432
    %v440 = vsel %vm439, %v437, %v415
    %v441 = vsel %vm439, %v438, %v416
    %vm442 = vcmask 1043456
    %v443 = vsel %vm442, %v440, %v421
    %v444 = vsel %vm442, %v441, %v422
    %vm445 = vcmask 1044480
    %v446 = vsel %vm445, %v443, %v425
    %v447 = vsel %vm445, %v444, %v426
    %vm448 = vcmask 1045504
    %v449 = vsel %vm448, %v446, %v429
    %v450 = vsel %vm448, %v447, %v430
    %v451 = vld [vmem:[%s2] sm:$0x3]
    %v453 = vperm.slane %v451, 0
    %v454 = vperm.slane %v451, 1
    %v457 = vadd.f32 %v449, %v453
    %v458 = vadd.f32 %v450, %v454
    %v459 = vmax.f32 %v457, 0.0
    %v460 = vmax.f32 %v458, 0.0
    %v461 = vpack.c.bf16 %v459, %v459
    %v462 = vpack.c.bf16 %v460, %v460
    %v463 = vld [vmem:[#allocation5] sm:$0xf]
    %v464 = vld [vmem:[#allocation5 + $0x4] sm:$0xf]
    %v465 = vld [vmem:[#allocation5 + $0x8] sm:$0xf]
    %v466 = vld [vmem:[#allocation5 + $0xc] sm:$0xf]
    %v467 = vld [vmem:[#allocation5 + $0x10] sm:$0xf]
    %v468 = vld [vmem:[#allocation5 + $0x14] sm:$0xf]
    %v469 = vld [vmem:[#allocation5 + $0x18] sm:$0xf]
    %v470 = vld [vmem:[#allocation5 + $0x1c] sm:$0xf]
    %v471 = vld [vmem:[#allocation5 + $0x20] sm:$0xf]
    %v472 = vld [vmem:[#allocation5 + $0x24] sm:$0xf]
    %v473 = vld [vmem:[#allocation5 + $0x28] sm:$0xf]
    %v474 = vld [vmem:[#allocation5 + $0x2c] sm:$0xf]
    %v475 = vld [vmem:[#allocation5 + $0x30] sm:$0xf]
    %v476 = vld [vmem:[#allocation5 + $0x34] sm:$0xf]
    %v477 = vld [vmem:[#allocation5 + $0x38] sm:$0xf]
    %v478 = vld [vmem:[#allocation5 + $0x3c] sm:$0xf]
    %v479 = vld [vmem:[#allocation5 + $0x40] sm:$0xf]
    %v480 = vld [vmem:[#allocation5 + $0x44] sm:$0xf]
    %v481 = vld [vmem:[#allocation5 + $0x48] sm:$0xf]
    %v482 = vld [vmem:[#allocation5 + $0x4c] sm:$0xf]
    %v483 = vld [vmem:[#allocation5 + $0x50] sm:$0xf]
    %v484 = vld [vmem:[#allocation5 + $0x54] sm:$0xf]
    %v485 = vld [vmem:[#allocation5 + $0x58] sm:$0xf]
    %v486 = vld [vmem:[#allocation5 + $0x5c] sm:$0xf]
    %v487 = vld [vmem:[#allocation5 + $0x60] sm:$0xf]
    %v488 = vld [vmem:[#allocation5 + $0x64] sm:$0xf]
    %v489 = vld [vmem:[#allocation5 + $0x68] sm:$0xf]
    %v490 = vld [vmem:[#allocation5 + $0x6c] sm:$0xf]
    %s491 = scalar_lea.vmem [#allocation5], 112
    %v492 = vld [vmem:[%s491] sm:$0xf]
    %v493 = vld [vmem:[%s491 + $0x4] sm:$0xf]
    %v494 = vld [vmem:[%s491 + $0x8] sm:$0xf]
    %v495 = vld [vmem:[%s491 + $0xc] sm:$0xf]
    %v496 = vld [vmem:[%s491 + $0x10] sm:$0xf]
    %v497 = vld [vmem:[%s491 + $0x14] sm:$0xf]
    %v498 = vld [vmem:[%s491 + $0x18] sm:$0xf]
    %v499 = vld [vmem:[%s491 + $0x1c] sm:$0xf]
    %v500 = vld [vmem:[%s491 + $0x20] sm:$0xf]
    %v501 = vld [vmem:[%s491 + $0x24] sm:$0xf]
    %v502 = vld [vmem:[%s491 + $0x28] sm:$0xf]
    %v503 = vld [vmem:[%s491 + $0x2c] sm:$0xf]
    %v504 = vld [vmem:[%s491 + $0x30] sm:$0xf]
    %v505 = vld [vmem:[%s491 + $0x34] sm:$0xf]
    %v506 = vld [vmem:[%s491 + $0x38] sm:$0xf]
    %v507 = vld [vmem:[%s491 + $0x3c] sm:$0xf]
    %v508 = vld [vmem:[%s491 + $0x40] sm:$0xf]
    %v509 = vld [vmem:[%s491 + $0x44] sm:$0xf]
    %v510 = vld [vmem:[%s491 + $0x48] sm:$0xf]
    %v511 = vld [vmem:[%s491 + $0x4c] sm:$0xf]
    %v512 = vld [vmem:[%s491 + $0x50] sm:$0xf]
    %v513 = vld [vmem:[%s491 + $0x54] sm:$0xf]
    %v514 = vld [vmem:[%s491 + $0x58] sm:$0xf]
    %v515 = vld [vmem:[%s491 + $0x5c] sm:$0xf]
    %v516 = vld [vmem:[%s491 + $0x60] sm:$0xf]
    %v517 = vld [vmem:[%s491 + $0x64] sm:$0xf]
    %v518 = vld [vmem:[%s491 + $0x68] sm:$0xf]
    %v519 = vld [vmem:[%s491 + $0x6c] sm:$0xf]
    %v521 = vshrl.u32 %v461, 16
    %v523 = vshll.u32 %v461, 16
    %v525 = vrot.slane %v523, 1
    %v526 = vor.u32 %v521, %v525
    %v528 = vshrl.u32 %v462, 16
    %v530 = vshll.u32 %v462, 16
    %v532 = vrot.slane %v530, 1
    %v533 = vor.u32 %v528, %v532
    %v563 = vunpack.c.l.b16 %v492
    %v564 = vunpack.c.l.b16 %v493
    %v565 = vunpack.c.l.b16 %v494
    %v566 = vunpack.c.l.b16 %v495
    %v567 = vunpack.c.l.b16 %v496
    %v568 = vunpack.c.l.b16 %v497
    %v569 = vunpack.c.l.b16 %v498
    %v570 = vunpack.c.l.b16 %v499
    %v571 = vunpack.c.l.b16 %v500
    %v572 = vunpack.c.l.b16 %v501
    %v573 = vunpack.c.l.b16 %v502
    %v574 = vunpack.c.l.b16 %v503
    %v575 = vunpack.c.l.b16 %v504
    %v576 = vunpack.c.l.b16 %v505
    %v577 = vunpack.c.l.b16 %v506
    %v578 = vunpack.c.l.b16 %v507
    %v579 = vunpack.c.l.b16 %v508
    %v580 = vunpack.c.l.b16 %v509
    %v581 = vunpack.c.l.b16 %v510
    %v582 = vunpack.c.l.b16 %v511
    %v583 = vunpack.c.l.b16 %v512
    %v584 = vunpack.c.l.b16 %v513
    %v585 = vunpack.c.l.b16 %v514
    %v586 = vunpack.c.l.b16 %v515
    %v587 = vunpack.c.l.b16 %v516
    %v588 = vunpack.c.l.b16 %v517
    %v589 = vunpack.c.l.b16 %v518
    %v590 = vunpack.c.l.b16 %v519
    %v591 = vpack.c.b16 %v564, %v563
    %v592 = vpack.c.b16 %v566, %v565
    %v593 = vpack.c.b16 %v568, %v567
    %v594 = vpack.c.b16 %v570, %v569
    %v595 = vpack.c.b16 %v572, %v571
    %v596 = vpack.c.b16 %v574, %v573
    %v597 = vpack.c.b16 %v576, %v575
    %v598 = vpack.c.b16 %v578, %v577
    %v599 = vpack.c.b16 %v580, %v579
    %v600 = vpack.c.b16 %v582, %v581
    %v601 = vpack.c.b16 %v584, %v583
    %v602 = vpack.c.b16 %v586, %v585
    %v603 = vpack.c.b16 %v588, %v587
    %v604 = vpack.c.b16 %v590, %v589
    %vm619 = vcmask 785408
    %v621 = vsel %vm619, %v533, 0
    %623 = vmatpush.bf16.msra.mxu0 %v598
    %624 = vmatpush.bf16.msra.mxu0 %v597
    %625 = vmatpush.bf16.msra.mxu0 %v596
    %626 = vmatpush.bf16.msra.mxu0 %v595
    %627 = vmatpush.bf16.msra.mxu0 %v594
    %628 = vmatpush.bf16.msra.mxu0 %v593
    %629 = vmatpush.bf16.msra.mxu0 %v592
    %630 = vmatpush.bf16.msra.mxu0 %v591
    %631 = vmatmul.bf16.gmra.mxu0 %v526
    %v632 = vpop.f32.mrf.mxu0
    %v633 = vadd.f32 0.0, %v632
    %v634 = vpop.f32.mrf.mxu0
    %635 = vdwg.mxu0
    %636 = vmatpush.bf16.msra.mxu0 0
    %637 = vmatpush.bf16.msra.mxu0 0
    %638 = vmatpush.bf16.msra.mxu0 %v604
    %639 = vmatpush.bf16.msra.mxu0 %v603
    %640 = vmatpush.bf16.msra.mxu0 %v602
    %641 = vmatpush.bf16.msra.mxu0 %v601
    %642 = vmatpush.bf16.msra.mxu0 %v600
    %643 = vmatpush.bf16.msra.mxu0 %v599
    %644 = vmatmul.bf16.gmra.mxu0 %v621
    %v645 = vpop.f32.mrf.mxu0
    %v646 = vadd.f32 %v633, %v645
    %v647 = vpop.f32.mrf.mxu0
    %648 = vdwg.mxu0
    %v677 = vunpack.c.l.b16 %v463
    %v678 = vunpack.c.l.b16 %v464
    %v679 = vunpack.c.l.b16 %v465
    %v680 = vunpack.c.l.b16 %v466
    %v681 = vunpack.c.l.b16 %v467
    %v682 = vunpack.c.l.b16 %v468
    %v683 = vunpack.c.l.b16 %v469
    %v684 = vunpack.c.l.b16 %v470
    %v685 = vunpack.c.l.b16 %v471
    %v686 = vunpack.c.l.b16 %v472
    %v687 = vunpack.c.l.b16 %v473
    %v688 = vunpack.c.l.b16 %v474
    %v689 = vunpack.c.l.b16 %v475
    %v690 = vunpack.c.l.b16 %v476
    %v691 = vunpack.c.l.b16 %v477
    %v692 = vunpack.c.l.b16 %v478
    %v693 = vunpack.c.l.b16 %v479
    %v694 = vunpack.c.l.b16 %v480
    %v695 = vunpack.c.l.b16 %v481
    %v696 = vunpack.c.l.b16 %v482
    %v697 = vunpack.c.l.b16 %v483
    %v698 = vunpack.c.l.b16 %v484
    %v699 = vunpack.c.l.b16 %v485
    %v700 = vunpack.c.l.b16 %v486
    %v701 = vunpack.c.l.b16 %v487
    %v702 = vunpack.c.l.b16 %v488
    %v703 = vunpack.c.l.b16 %v489
    %v704 = vunpack.c.l.b16 %v490
    %v705 = vpack.c.b16 %v678, %v677
    %v706 = vpack.c.b16 %v680, %v679
    %v707 = vpack.c.b16 %v682, %v681
    %v708 = vpack.c.b16 %v684, %v683
    %v709 = vpack.c.b16 %v686, %v685
    %v710 = vpack.c.b16 %v688, %v687
    %v711 = vpack.c.b16 %v690, %v689
    %v712 = vpack.c.b16 %v692, %v691
    %v713 = vpack.c.b16 %v694, %v693
    %v714 = vpack.c.b16 %v696, %v695
    %v715 = vpack.c.b16 %v698, %v697
    %v716 = vpack.c.b16 %v700, %v699
    %v717 = vpack.c.b16 %v702, %v701
    %v718 = vpack.c.b16 %v704, %v703
    %v733 = vsel %vm619, %v462, 0
    %735 = vmatpush.bf16.msra.mxu0 %v712
    %736 = vmatpush.bf16.msra.mxu0 %v711
    %737 = vmatpush.bf16.msra.mxu0 %v710
    %738 = vmatpush.bf16.msra.mxu0 %v709
    %739 = vmatpush.bf16.msra.mxu0 %v708
    %740 = vmatpush.bf16.msra.mxu0 %v707
    %741 = vmatpush.bf16.msra.mxu0 %v706
    %742 = vmatpush.bf16.msra.mxu0 %v705
    %743 = vmatmul.bf16.gmra.mxu0 %v461
    %v744 = vpop.f32.mrf.mxu0
    %v745 = vadd.f32 %v646, %v744
    %v746 = vpop.f32.mrf.mxu0
    %747 = vdwg.mxu0
    %748 = vmatpush.bf16.msra.mxu0 0
    %749 = vmatpush.bf16.msra.mxu0 0
    %750 = vmatpush.bf16.msra.mxu0 %v718
    %751 = vmatpush.bf16.msra.mxu0 %v717
    %752 = vmatpush.bf16.msra.mxu0 %v716
    %753 = vmatpush.bf16.msra.mxu0 %v715
    %754 = vmatpush.bf16.msra.mxu0 %v714
    %755 = vmatpush.bf16.msra.mxu0 %v713
    %756 = vmatmul.bf16.gmra.mxu0 %v733
    %v757 = vpop.f32.mrf.mxu0
    %v758 = vadd.f32 %v745, %v757
    %v759 = vpop.f32.mrf.mxu0
    %760 = vdwg.mxu0
    %s761 = scalar_lea.vmem [#allocation5], 224
    %v762 = vld [vmem:[%s761] sm:$0xf]
    %v763 = vld [vmem:[%s761 + $0x4] sm:$0xf]
    %v764 = vld [vmem:[%s761 + $0x8] sm:$0xf]
    %v765 = vld [vmem:[%s761 + $0xc] sm:$0xf]
    %v766 = vld [vmem:[%s761 + $0x10] sm:$0xf]
    %v767 = vld [vmem:[%s761 + $0x14] sm:$0xf]
    %v768 = vld [vmem:[%s761 + $0x18] sm:$0xf]
    %v769 = vld [vmem:[%s761 + $0x1c] sm:$0xf]
    %v770 = vld [vmem:[%s761 + $0x20] sm:$0xf]
    %v771 = vld [vmem:[%s761 + $0x24] sm:$0xf]
    %v772 = vld [vmem:[%s761 + $0x28] sm:$0xf]
    %v773 = vld [vmem:[%s761 + $0x2c] sm:$0xf]
    %v774 = vld [vmem:[%s761 + $0x30] sm:$0xf]
    %v775 = vld [vmem:[%s761 + $0x34] sm:$0xf]
    %v776 = vld [vmem:[%s761 + $0x38] sm:$0xf]
    %v777 = vld [vmem:[%s761 + $0x3c] sm:$0xf]
    %v778 = vld [vmem:[%s761 + $0x40] sm:$0xf]
    %v779 = vld [vmem:[%s761 + $0x44] sm:$0xf]
    %v780 = vld [vmem:[%s761 + $0x48] sm:$0xf]
    %v781 = vld [vmem:[%s761 + $0x4c] sm:$0xf]
    %v782 = vld [vmem:[%s761 + $0x50] sm:$0xf]
    %v783 = vld [vmem:[%s761 + $0x54] sm:$0xf]
    %v784 = vld [vmem:[%s761 + $0x58] sm:$0xf]
    %v785 = vld [vmem:[%s761 + $0x5c] sm:$0xf]
    %v786 = vld [vmem:[%s761 + $0x60] sm:$0xf]
    %v787 = vld [vmem:[%s761 + $0x64] sm:$0xf]
    %v788 = vld [vmem:[%s761 + $0x68] sm:$0xf]
    %v789 = vld [vmem:[%s761 + $0x6c] sm:$0xf]
    %v792 = vrot.slane %v461, 1
    %v793 = vrot.slane %v462, 1
    %v823 = vunpack.c.l.b16 %v762
    %v824 = vunpack.c.l.b16 %v763
    %v825 = vunpack.c.l.b16 %v764
    %v826 = vunpack.c.l.b16 %v765
    %v827 = vunpack.c.l.b16 %v766
    %v828 = vunpack.c.l.b16 %v767
    %v829 = vunpack.c.l.b16 %v768
    %v830 = vunpack.c.l.b16 %v769
    %v831 = vunpack.c.l.b16 %v770
    %v832 = vunpack.c.l.b16 %v771
    %v833 = vunpack.c.l.b16 %v772
    %v834 = vunpack.c.l.b16 %v773
    %v835 = vunpack.c.l.b16 %v774
    %v836 = vunpack.c.l.b16 %v775
    %v837 = vunpack.c.l.b16 %v776
    %v838 = vunpack.c.l.b16 %v777
    %v839 = vunpack.c.l.b16 %v778
    %v840 = vunpack.c.l.b16 %v779
    %v841 = vunpack.c.l.b16 %v780
    %v842 = vunpack.c.l.b16 %v781
    %v843 = vunpack.c.l.b16 %v782
    %v844 = vunpack.c.l.b16 %v783
    %v845 = vunpack.c.l.b16 %v784
    %v846 = vunpack.c.l.b16 %v785
    %v847 = vunpack.c.l.b16 %v786
    %v848 = vunpack.c.l.b16 %v787
    %v849 = vunpack.c.l.b16 %v788
    %v850 = vunpack.c.l.b16 %v789
    %v851 = vpack.c.b16 %v824, %v823
    %v852 = vpack.c.b16 %v826, %v825
    %v853 = vpack.c.b16 %v828, %v827
    %v854 = vpack.c.b16 %v830, %v829
    %v855 = vpack.c.b16 %v832, %v831
    %v856 = vpack.c.b16 %v834, %v833
    %v857 = vpack.c.b16 %v836, %v835
    %v858 = vpack.c.b16 %v838, %v837
    %v859 = vpack.c.b16 %v840, %v839
    %v860 = vpack.c.b16 %v842, %v841
    %v861 = vpack.c.b16 %v844, %v843
    %v862 = vpack.c.b16 %v846, %v845
    %v863 = vpack.c.b16 %v848, %v847
    %v864 = vpack.c.b16 %v850, %v849
    %v880 = vsel %vm619, %v793, 0
    %882 = vmatpush.bf16.msra.mxu0 %v858
    %883 = vmatpush.bf16.msra.mxu0 %v857
    %884 = vmatpush.bf16.msra.mxu0 %v856
    %885 = vmatpush.bf16.msra.mxu0 %v855
    %886 = vmatpush.bf16.msra.mxu0 %v854
    %887 = vmatpush.bf16.msra.mxu0 %v853
    %888 = vmatpush.bf16.msra.mxu0 %v852
    %889 = vmatpush.bf16.msra.mxu0 %v851
    %890 = vmatmul.bf16.gmra.mxu0 %v792
    %v891 = vpop.f32.mrf.mxu0
    %v892 = vadd.f32 0.0, %v891
    %v893 = vpop.f32.mrf.mxu0
    %894 = vdwg.mxu0
    %895 = vmatpush.bf16.msra.mxu0 0
    %896 = vmatpush.bf16.msra.mxu0 0
    %897 = vmatpush.bf16.msra.mxu0 %v864
    %898 = vmatpush.bf16.msra.mxu0 %v863
    %899 = vmatpush.bf16.msra.mxu0 %v862
    %900 = vmatpush.bf16.msra.mxu0 %v861
    %901 = vmatpush.bf16.msra.mxu0 %v860
    %902 = vmatpush.bf16.msra.mxu0 %v859
    %903 = vmatmul.bf16.gmra.mxu0 %v880
    %v904 = vpop.f32.mrf.mxu0
    %v905 = vadd.f32 %v892, %v904
    %v906 = vpop.f32.mrf.mxu0
    %907 = vdwg.mxu0
    %v908 = vadd.f32 %v758, %v905
    %v910 = vrot.slane %v908, 1
    %v912 = vmax.f32 %v908, %v910
    %v914 = vrot.slane %v912, 1
    %v916 = vsel %vm433, %v912, %v914
    %918 = vrot.lane.b32.xlu0 %v916, 64
    %v919 = vpop.permute.xlu0 %918
    %v921 = vmax.f32 %v916, %v919
    %v922 = vld [vmem:[%s4] sm:$0x1]
    %v924 = vperm.slane %v922, 0
    %v926 = vadd.f32 %v921, %v924
    %v927 = vmax.f32 %v926, 0.0
    %v929 = vrot.slane %v927, 1
    %930 = vrot.lane.b32.xlu0 %v929, 64
    %v931 = vpop.permute.xlu0 %930
    %vm933 = vcmask 523264
    %v934 = vsel %vm933, %v927, %v931
    %v935 = vld [vmem:[#allocation2 + $0x10] sm:$0xff]
    %v936 = vld [vmem:[#allocation2 + $0x18] sm:$0x3f]
    %v937 = vpack.c.bf16 %v936, %v935
    %v938 = vld [vmem:[#allocation2 + $0x11] sm:$0xff]
    %v939 = vld [vmem:[#allocation2 + $0x19] sm:$0x3f]
    %v940 = vpack.c.bf16 %v939, %v938
    %v942 = vsel %vm124, %v940, 0
    %944 = vmatpush.bf16.msra.mxu0 0
    %945 = vmatpush.bf16.msra.mxu0 0
    %946 = vmatpush.bf16.msra.mxu0 0
    %947 = vmatpush.bf16.msra.mxu0 0
    %948 = vmatpush.bf16.msra.mxu0 0
    %949 = vmatpush.bf16.msra.mxu0 0
    %950 = vmatpush.bf16.msra.mxu0 0
    %951 = vmatpush.bf16.msra.mxu0 %v116
    %952 = vmatmul.bf16.gmra.mxu0 %v942
    %v953 = vpop.f32.mrf.mxu0
    %v954 = vadd.f32 0.0, %v953
    %v955 = vpop.f32.mrf.mxu0
    %v956 = vadd.f32 0.0, %v955
    %957 = vdwg.mxu0
    %958 = vmatpush.bf16.msra.mxu0 0
    %959 = vmatpush.bf16.msra.mxu0 0
    %960 = vmatpush.bf16.msra.mxu0 0
    %961 = vmatpush.bf16.msra.mxu0 0
    %962 = vmatpush.bf16.msra.mxu0 0
    %963 = vmatpush.bf16.msra.mxu0 0
    %964 = vmatpush.bf16.msra.mxu0 0
    %965 = vmatpush.bf16.msra.mxu0 %v117
    %966 = vmatmul.bf16.gmra.mxu0 %v942
    %v967 = vpop.f32.mrf.mxu0
    %v968 = vadd.f32 0.0, %v967
    %v969 = vpop.f32.mrf.mxu0
    %v970 = vadd.f32 0.0, %v969
    %971 = vdwg.mxu0
    %972 = vmatpush.bf16.msra.mxu0 0
    %973 = vmatpush.bf16.msra.mxu0 0
    %974 = vmatpush.bf16.msra.mxu0 0
    %975 = vmatpush.bf16.msra.mxu0 0
    %976 = vmatpush.bf16.msra.mxu0 0
    %977 = vmatpush.bf16.msra.mxu0 0
    %978 = vmatpush.bf16.msra.mxu0 0
    %979 = vmatpush.bf16.msra.mxu0 %v118
    %980 = vmatmul.bf16.gmra.mxu0 %v942
    %v981 = vpop.f32.mrf.mxu0
    %v982 = vadd.f32 0.0, %v981
    %v983 = vpop.f32.mrf.mxu0
    %v984 = vadd.f32 0.0, %v983
    %985 = vdwg.mxu0
    %986 = vmatpush.bf16.msra.mxu0 0
    %987 = vmatpush.bf16.msra.mxu0 0
    %988 = vmatpush.bf16.msra.mxu0 0
    %989 = vmatpush.bf16.msra.mxu0 0
    %990 = vmatpush.bf16.msra.mxu0 0
    %991 = vmatpush.bf16.msra.mxu0 0
    %992 = vmatpush.bf16.msra.mxu0 0
    %993 = vmatpush.bf16.msra.mxu0 %v119
    %994 = vmatmul.bf16.gmra.mxu0 %v942
    %v995 = vpop.f32.mrf.mxu0
    %v996 = vadd.f32 0.0, %v995
    %v997 = vpop.f32.mrf.mxu0
    %v998 = vadd.f32 0.0, %v997
    %999 = vdwg.mxu0
    %v1001 = vsel %vm124, %v937, 0
    %1003 = vmatpush.bf16.msra.mxu0 0
    %1004 = vmatpush.bf16.msra.mxu0 0
    %1005 = vmatpush.bf16.msra.mxu0 0
    %1006 = vmatpush.bf16.msra.mxu0 0
    %1007 = vmatpush.bf16.msra.mxu0 0
    %1008 = vmatpush.bf16.msra.mxu0 0
    %1009 = vmatpush.bf16.msra.mxu0 0
    %1010 = vmatpush.bf16.msra.mxu0 %v196
    %1011 = vmatmul.bf16.gmra.mxu0 %v1001
    %v1012 = vpop.f32.mrf.mxu0
    %v1013 = vadd.f32 %v954, %v1012
    %v1014 = vpop.f32.mrf.mxu0
    %v1015 = vadd.f32 %v956, %v1014
    %1016 = vdwg.mxu0
    %1017 = vmatpush.bf16.msra.mxu0 0
    %1018 = vmatpush.bf16.msra.mxu0 0
    %1019 = vmatpush.bf16.msra.mxu0 0
    %1020 = vmatpush.bf16.msra.mxu0 0
    %1021 = vmatpush.bf16.msra.mxu0 0
    %1022 = vmatpush.bf16.msra.mxu0 0
    %1023 = vmatpush.bf16.msra.mxu0 0
    %1024 = vmatpush.bf16.msra.mxu0 %v197
    %1025 = vmatmul.bf16.gmra.mxu0 %v1001
    %v1026 = vpop.f32.mrf.mxu0
    %v1027 = vadd.f32 %v968, %v1026
    %v1028 = vpop.f32.mrf.mxu0
    %v1029 = vadd.f32 %v970, %v1028
    %1030 = vdwg.mxu0
    %1031 = vmatpush.bf16.msra.mxu0 0
    %1032 = vmatpush.bf16.msra.mxu0 0
    %1033 = vmatpush.bf16.msra.mxu0 0
    %1034 = vmatpush.bf16.msra.mxu0 0
    %1035 = vmatpush.bf16.msra.mxu0 0
    %1036 = vmatpush.bf16.msra.mxu0 0
    %1037 = vmatpush.bf16.msra.mxu0 0
    %1038 = vmatpush.bf16.msra.mxu0 %v198
    %1039 = vmatmul.bf16.gmra.mxu0 %v1001
    %v1040 = vpop.f32.mrf.mxu0
    %v1041 = vadd.f32 %v982, %v1040
    %v1042 = vpop.f32.mrf.mxu0
    %v1043 = vadd.f32 %v984, %v1042
    %1044 = vdwg.mxu0
    %1045 = vmatpush.bf16.msra.mxu0 0
    %1046 = vmatpush.bf16.msra.mxu0 0
    %1047 = vmatpush.bf16.msra.mxu0 0
    %1048 = vmatpush.bf16.msra.mxu0 0
    %1049 = vmatpush.bf16.msra.mxu0 0
    %1050 = vmatpush.bf16.msra.mxu0 0
    %1051 = vmatpush.bf16.msra.mxu0 0
    %1052 = vmatpush.bf16.msra.mxu0 %v199
    %1053 = vmatmul.bf16.gmra.mxu0 %v1001
    %v1054 = vpop.f32.mrf.mxu0
    %v1055 = vadd.f32 %v996, %v1054
    %v1056 = vpop.f32.mrf.mxu0
    %v1057 = vadd.f32 %v998, %v1056
    %1058 = vdwg.mxu0
    %v1059 = vld [vmem:[#allocation2 + $0x12] sm:$0xff]
    %v1060 = vld [vmem:[#allocation2 + $0x1a] sm:$0x3f]
    %v1061 = vpack.c.bf16 %v1060, %v1059
    %v1063 = vsel %vm124, %v1061, 0
    %1065 = vmatpush.bf16.msra.mxu0 0
    %1066 = vmatpush.bf16.msra.mxu0 0
    %1067 = vmatpush.bf16.msra.mxu0 0
    %1068 = vmatpush.bf16.msra.mxu0 0
    %1069 = vmatpush.bf16.msra.mxu0 0
    %1070 = vmatpush.bf16.msra.mxu0 0
    %1071 = vmatpush.bf16.msra.mxu0 0
    %1072 = vmatpush.bf16.msra.mxu0 %v283
    %1073 = vmatmul.bf16.gmra.mxu0 %v1063
    %v1074 = vpop.f32.mrf.mxu0
    %v1075 = vadd.f32 0.0, %v1074
    %v1076 = vpop.f32.mrf.mxu0
    %v1077 = vadd.f32 0.0, %v1076
    %1078 = vdwg.mxu0
    %1079 = vmatpush.bf16.msra.mxu0 0
    %1080 = vmatpush.bf16.msra.mxu0 0
    %1081 = vmatpush.bf16.msra.mxu0 0
    %1082 = vmatpush.bf16.msra.mxu0 0
    %1083 = vmatpush.bf16.msra.mxu0 0
    %1084 = vmatpush.bf16.msra.mxu0 0
    %1085 = vmatpush.bf16.msra.mxu0 0
    %1086 = vmatpush.bf16.msra.mxu0 %v284
    %1087 = vmatmul.bf16.gmra.mxu0 %v1063
    %v1088 = vpop.f32.mrf.mxu0
    %v1089 = vadd.f32 0.0, %v1088
    %v1090 = vpop.f32.mrf.mxu0
    %v1091 = vadd.f32 0.0, %v1090
    %1092 = vdwg.mxu0
    %1093 = vmatpush.bf16.msra.mxu0 0
    %1094 = vmatpush.bf16.msra.mxu0 0
    %1095 = vmatpush.bf16.msra.mxu0 0
    %1096 = vmatpush.bf16.msra.mxu0 0
    %1097 = vmatpush.bf16.msra.mxu0 0
    %1098 = vmatpush.bf16.msra.mxu0 0
    %1099 = vmatpush.bf16.msra.mxu0 0
    %1100 = vmatpush.bf16.msra.mxu0 %v285
    %1101 = vmatmul.bf16.gmra.mxu0 %v1063
    %v1102 = vpop.f32.mrf.mxu0
    %v1103 = vadd.f32 0.0, %v1102
    %v1104 = vpop.f32.mrf.mxu0
    %v1105 = vadd.f32 0.0, %v1104
    %1106 = vdwg.mxu0
    %1107 = vmatpush.bf16.msra.mxu0 0
    %1108 = vmatpush.bf16.msra.mxu0 0
    %1109 = vmatpush.bf16.msra.mxu0 0
    %1110 = vmatpush.bf16.msra.mxu0 0
    %1111 = vmatpush.bf16.msra.mxu0 0
    %1112 = vmatpush.bf16.msra.mxu0 0
    %1113 = vmatpush.bf16.msra.mxu0 0
    %1114 = vmatpush.bf16.msra.mxu0 %v286
    %1115 = vmatmul.bf16.gmra.mxu0 %v1063
    %v1116 = vpop.f32.mrf.mxu0
    %v1117 = vadd.f32 0.0, %v1116
    %v1118 = vpop.f32.mrf.mxu0
    %v1119 = vadd.f32 0.0, %v1118
    %1120 = vdwg.mxu0
    %v1121 = vadd.f32 %v1013, %v1075
    %v1122 = vadd.f32 %v1027, %v1089
    %v1123 = vadd.f32 %v1041, %v1103
    %v1124 = vadd.f32 %v1055, %v1117
    %v1125 = vadd.f32 %v1015, %v1077
    %v1126 = vadd.f32 %v1029, %v1091
    %v1127 = vadd.f32 %v1043, %v1105
    %v1128 = vadd.f32 %v1057, %v1119
    %1135 = vrot.lane.b32.xlu0 %v1122, 32
    %v1136 = vpop.permute.xlu0 %1135
    %1137 = vrot.lane.b32.xlu0 %v1123, 32
    %v1138 = vpop.permute.xlu0 %1137
    %1139 = vrot.lane.b32.xlu0 %v1124, 32
    %v1140 = vpop.permute.xlu0 %1139
    %1141 = vrot.lane.b32.xlu0 %v1126, 32
    %v1142 = vpop.permute.xlu0 %1141
    %1143 = vrot.lane.b32.xlu0 %v1127, 32
    %v1144 = vpop.permute.xlu0 %1143
    %1145 = vrot.lane.b32.xlu0 %v1128, 32
    %v1146 = vpop.permute.xlu0 %1145
    %v1147 = vsel %vm376, %v1136, %v1138
    %v1148 = vsel %vm376, %v1138, %v1140
    %v1149 = vsel %vm376, %v1142, %v1144
    %v1150 = vsel %vm376, %v1144, %v1146
    %v1155 = vmax.f32 %v1121, %v1147
    %v1156 = vmax.f32 %v1122, %v1148
    %v1157 = vmax.f32 %v1125, %v1149
    %v1158 = vmax.f32 %v1126, %v1150
    %v1161 = vrot.slane %v1155, 1
    %v1162 = vrot.slane %v1156, 1
    %v1165 = vmax.f32 %v1155, %v1161
    %v1166 = vmax.f32 %v1156, %v1162
    %v1169 = vrot.slane %v1157, 1
    %v1170 = vrot.slane %v1158, 1
    %v1173 = vmax.f32 %v1157, %v1169
    %v1174 = vmax.f32 %v1158, %v1170
    %v1177 = vrot.slane %v1165, 1
    %v1178 = vrot.slane %v1166, 1
    %v1181 = vrot.slane %v1165, 2
    %v1182 = vrot.slane %v1166, 2
    %v1185 = vrot.slane %v1165, 3
    %v1186 = vrot.slane %v1166, 3
    %v1191 = vrot.slane %v1173, 4
    %v1192 = vrot.slane %v1174, 4
    %v1195 = vrot.slane %v1173, 5
    %v1196 = vrot.slane %v1174, 5
    %v1199 = vrot.slane %v1173, 6
    %v1200 = vrot.slane %v1174, 6
    %v1203 = vsel %vm433, %v1165, %v1177
    %v1204 = vsel %vm433, %v1166, %v1178
    %v1205 = vsel %vm436, %v1203, %v1181
    %v1206 = vsel %vm436, %v1204, %v1182
    %v1207 = vsel %vm439, %v1205, %v1185
    %v1208 = vsel %vm439, %v1206, %v1186
    %v1209 = vsel %vm442, %v1207, %v1191
    %v1210 = vsel %vm442, %v1208, %v1192
    %v1211 = vsel %vm445, %v1209, %v1195
    %v1212 = vsel %vm445, %v1210, %v1196
    %v1213 = vsel %vm448, %v1211, %v1199
    %v1214 = vsel %vm448, %v1212, %v1200
    %v1215 = vadd.f32 %v1213, %v453
    %v1216 = vadd.f32 %v1214, %v454
    %v1217 = vmax.f32 %v1215, 0.0
    %v1218 = vmax.f32 %v1216, 0.0
    %v1219 = vpack.c.bf16 %v1217, %v1217
    %v1220 = vpack.c.bf16 %v1218, %v1218
    %v1222 = vshrl.u32 %v1219, 16
    %v1224 = vshll.u32 %v1219, 16
    %v1226 = vrot.slane %v1224, 1
    %v1227 = vor.u32 %v1222, %v1226
    %v1229 = vshrl.u32 %v1220, 16
    %v1231 = vshll.u32 %v1220, 16
    %v1233 = vrot.slane %v1231, 1
    %v1234 = vor.u32 %v1229, %v1233
    %v1237 = vsel %vm619, %v1234, 0
    %1239 = vmatpush.bf16.msra.mxu0 %v598
    %1240 = vmatpush.bf16.msra.mxu0 %v597
    %1241 = vmatpush.bf16.msra.mxu0 %v596
    %1242 = vmatpush.bf16.msra.mxu0 %v595
    %1243 = vmatpush.bf16.msra.mxu0 %v594
    %1244 = vmatpush.bf16.msra.mxu0 %v593
    %1245 = vmatpush.bf16.msra.mxu0 %v592
    %1246 = vmatpush.bf16.msra.mxu0 %v591
    %1247 = vmatmul.bf16.gmra.mxu0 %v1227
    %v1248 = vpop.f32.mrf.mxu0
    %v1249 = vadd.f32 0.0, %v1248
    %v1250 = vpop.f32.mrf.mxu0
    %1251 = vdwg.mxu0
    %1252 = vmatpush.bf16.msra.mxu0 0
    %1253 = vmatpush.bf16.msra.mxu0 0
    %1254 = vmatpush.bf16.msra.mxu0 %v604
    %1255 = vmatpush.bf16.msra.mxu0 %v603
    %1256 = vmatpush.bf16.msra.mxu0 %v602
    %1257 = vmatpush.bf16.msra.mxu0 %v601
    %1258 = vmatpush.bf16.msra.mxu0 %v600
    %1259 = vmatpush.bf16.msra.mxu0 %v599
    %1260 = vmatmul.bf16.gmra.mxu0 %v1237
    %v1261 = vpop.f32.mrf.mxu0
    %v1262 = vadd.f32 %v1249, %v1261
    %v1263 = vpop.f32.mrf.mxu0
    %1264 = vdwg.mxu0
    %v1265 = vsel %vm619, %v1220, 0
    %1267 = vmatpush.bf16.msra.mxu0 %v712
    %1268 = vmatpush.bf16.msra.mxu0 %v711
    %1269 = vmatpush.bf16.msra.mxu0 %v710
    %1270 = vmatpush.bf16.msra.mxu0 %v709
    %1271 = vmatpush.bf16.msra.mxu0 %v708
    %1272 = vmatpush.bf16.msra.mxu0 %v707
    %1273 = vmatpush.bf16.msra.mxu0 %v706
    %1274 = vmatpush.bf16.msra.mxu0 %v705
    %1275 = vmatmul.bf16.gmra.mxu0 %v1219
    %v1276 = vpop.f32.mrf.mxu0
    %v1277 = vadd.f32 %v1262, %v1276
    %v1278 = vpop.f32.mrf.mxu0
    %1279 = vdwg.mxu0
    %1280 = vmatpush.bf16.msra.mxu0 0
    %1281 = vmatpush.bf16.msra.mxu0 0
    %1282 = vmatpush.bf16.msra.mxu0 %v718
    %1283 = vmatpush.bf16.msra.mxu0 %v717
    %1284 = vmatpush.bf16.msra.mxu0 %v716
    %1285 = vmatpush.bf16.msra.mxu0 %v715
    %1286 = vmatpush.bf16.msra.mxu0 %v714
    %1287 = vmatpush.bf16.msra.mxu0 %v713
    %1288 = vmatmul.bf16.gmra.mxu0 %v1265
    %v1289 = vpop.f32.mrf.mxu0
    %v1290 = vadd.f32 %v1277, %v1289
    %v1291 = vpop.f32.mrf.mxu0
    %1292 = vdwg.mxu0
    %v1295 = vrot.slane %v1219, 1
    %v1296 = vrot.slane %v1220, 1
    %v1299 = vsel %vm619, %v1296, 0
    %1301 = vmatpush.bf16.msra.mxu0 %v858
    %1302 = vmatpush.bf16.msra.mxu0 %v857
    %1303 = vmatpush.bf16.msra.mxu0 %v856
    %1304 = vmatpush.bf16.msra.mxu0 %v855
    %1305 = vmatpush.bf16.msra.mxu0 %v854
    %1306 = vmatpush.bf16.msra.mxu0 %v853
    %1307 = vmatpush.bf16.msra.mxu0 %v852
    %1308 = vmatpush.bf16.msra.mxu0 %v851
    %1309 = vmatmul.bf16.gmra.mxu0 %v1295
    %v1310 = vpop.f32.mrf.mxu0
    %v1311 = vadd.f32 0.0, %v1310
    %v1312 = vpop.f32.mrf.mxu0
    %1313 = vdwg.mxu0
    %1314 = vmatpush.bf16.msra.mxu0 0
    %1315 = vmatpush.bf16.msra.mxu0 0
    %1316 = vmatpush.bf16.msra.mxu0 %v864
    %1317 = vmatpush.bf16.msra.mxu0 %v863
    %1318 = vmatpush.bf16.msra.mxu0 %v862
    %1319 = vmatpush.bf16.msra.mxu0 %v861
    %1320 = vmatpush.bf16.msra.mxu0 %v860
    %1321 = vmatpush.bf16.msra.mxu0 %v859
    %1322 = vmatmul.bf16.gmra.mxu0 %v1299
    %v1323 = vpop.f32.mrf.mxu0
    %v1324 = vadd.f32 %v1311, %v1323
    %v1325 = vpop.f32.mrf.mxu0
    %1326 = vdwg.mxu0
    %v1327 = vadd.f32 %v1290, %v1324
    %v1329 = vrot.slane %v1327, 1
    %v1331 = vmax.f32 %v1327, %v1329
    %v1333 = vrot.slane %v1331, 1
    %v1335 = vsel %vm433, %v1331, %v1333
    %1337 = vrot.lane.b32.xlu0 %v1335, 64
    %v1338 = vpop.permute.xlu0 %1337
    %v1340 = vmax.f32 %v1335, %v1338
    %v1341 = vadd.f32 %v1340, %v924
    %v1342 = vmax.f32 %v1341, 0.0
    %v1344 = vrot.slane %v1342, 1
    %1345 = vrot.lane.b32.xlu0 %v1344, 64
    %v1346 = vpop.permute.xlu0 %1345
    %v1348 = vsel %vm933, %v1342, %v1346
    %v1350 = vrot.slane %v1348, 7
    %v1352 = vsel %vm433, %v934, %v1350
    %v1353 = vpack.c.bf16 %v1352, %v1352
    %v1354 = vld [vmem:[%s5] sm:$0xf]
    %v1355 = vld [vmem:[%s5 + $0x4] sm:$0xf]
    %v1356 = vld [vmem:[%s5 + $0x8] sm:$0xf]
    %v1357 = vld [vmem:[%s5 + $0xc] sm:$0xf]
    %v1358 = vld [vmem:[%s5 + $0x10] sm:$0xf]
    %v1359 = vld [vmem:[%s5 + $0x14] sm:$0xf]
    %v1360 = vld [vmem:[%s5 + $0x18] sm:$0xf]
    %v1361 = vld [vmem:[%s5 + $0x1c] sm:$0xf]
    %v1362 = vld [vmem:[%s5 + $0x20] sm:$0xf]
    %v1363 = vld [vmem:[%s5 + $0x24] sm:$0xf]
    %v1364 = vld [vmem:[%s5 + $0x28] sm:$0xf]
    %v1365 = vld [vmem:[%s5 + $0x2c] sm:$0xf]
    %v1366 = vld [vmem:[%s5 + $0x30] sm:$0xf]
    %v1367 = vld [vmem:[%s5 + $0x34] sm:$0xf]
    %v1368 = vld [vmem:[%s5 + $0x38] sm:$0xf]
    %v1369 = vld [vmem:[%s5 + $0x3c] sm:$0xf]
    %v1370 = vld [vmem:[%s6] sm:$0x1]
    %v1372 = vperm.slane %v1370, 0
    %v1390 = vunpack.c.l.b16 %v1354
    %v1391 = vunpack.c.l.b16 %v1355
    %v1392 = vunpack.c.l.b16 %v1356
    %v1393 = vunpack.c.l.b16 %v1357
    %v1394 = vunpack.c.l.b16 %v1358
    %v1395 = vunpack.c.l.b16 %v1359
    %v1396 = vunpack.c.l.b16 %v1360
    %v1397 = vunpack.c.l.b16 %v1361
    %v1398 = vunpack.c.l.b16 %v1362
    %v1399 = vunpack.c.l.b16 %v1363
    %v1400 = vunpack.c.l.b16 %v1364
    %v1401 = vunpack.c.l.b16 %v1365
    %v1402 = vunpack.c.l.b16 %v1366
    %v1403 = vunpack.c.l.b16 %v1367
    %v1404 = vunpack.c.l.b16 %v1368
    %v1405 = vunpack.c.l.b16 %v1369
    %v1406 = vpack.c.b16 %v1391, %v1390
    %v1407 = vpack.c.b16 %v1393, %v1392
    %v1408 = vpack.c.b16 %v1395, %v1394
    %v1409 = vpack.c.b16 %v1397, %v1396
    %v1410 = vpack.c.b16 %v1399, %v1398
    %v1411 = vpack.c.b16 %v1401, %v1400
    %v1412 = vpack.c.b16 %v1403, %v1402
    %v1413 = vpack.c.b16 %v1405, %v1404
    %1422 = vmatpush.bf16.msra.mxu0 %v1413
    %1423 = vmatpush.bf16.msra.mxu0 %v1412
    %1424 = vmatpush.bf16.msra.mxu0 %v1411
    %1425 = vmatpush.bf16.msra.mxu0 %v1410
    %1426 = vmatpush.bf16.msra.mxu0 %v1409
    %1427 = vmatpush.bf16.msra.mxu0 %v1408
    %1428 = vmatpush.bf16.msra.mxu0 %v1407
    %1429 = vmatpush.bf16.msra.mxu0 %v1406
    %1430 = vmatmul.bf16.gmra.mxu0 %v1353
    %v1431 = vpop.f32.mrf.mxu0
    %v1432 = vadd.f32 %v1372, %v1431
    %v1433 = vpop.f32.mrf.mxu0
    %1434 = vdwg.mxu0
    %v1435 = vmax.f32 %v1432, 0.0
    %v1436 = vpack.c.bf16 %v1435, %v1435
    %v1437 = vld [vmem:[#allocation7] sm:$0xf]
    %v1438 = vld [vmem:[#allocation7 + $0x4] sm:$0xf]
    %v1439 = vld [vmem:[#allocation7 + $0x8] sm:$0xf]
    %v1440 = vld [vmem:[#allocation7 + $0xc] sm:$0xf]
    %v1441 = vld [vmem:[#allocation7 + $0x10] sm:$0xf]
    %v1442 = vld [vmem:[#allocation7 + $0x14] sm:$0xf]
    %v1443 = vld [vmem:[#allocation7 + $0x18] sm:$0xf]
    %v1444 = vld [vmem:[#allocation7 + $0x1c] sm:$0xf]
    %v1445 = vld [vmem:[%s8] sm:$0x1]
    %v1447 = vperm.slane %v1445, 0
    %v1457 = vunpack.c.l.b16 %v1437
    %v1458 = vunpack.c.l.b16 %v1438
    %v1459 = vunpack.c.l.b16 %v1439
    %v1460 = vunpack.c.l.b16 %v1440
    %v1461 = vunpack.c.l.b16 %v1441
    %v1462 = vunpack.c.l.b16 %v1442
    %v1463 = vunpack.c.l.b16 %v1443
    %v1464 = vunpack.c.l.b16 %v1444
    %v1465 = vpack.c.b16 %v1458, %v1457
    %v1466 = vpack.c.b16 %v1460, %v1459
    %v1467 = vpack.c.b16 %v1462, %v1461
    %v1468 = vpack.c.b16 %v1464, %v1463
    %v1474 = vsel %vm933, %v1436, 0
    %1476 = vmatpush.bf16.msra.mxu0 0
    %1477 = vmatpush.bf16.msra.mxu0 0
    %1478 = vmatpush.bf16.msra.mxu0 0
    %1479 = vmatpush.bf16.msra.mxu0 0
    %1480 = vmatpush.bf16.msra.mxu0 %v1468
    %1481 = vmatpush.bf16.msra.mxu0 %v1467
    %1482 = vmatpush.bf16.msra.mxu0 %v1466
    %1483 = vmatpush.bf16.msra.mxu0 %v1465
    %1484 = vmatmul.bf16.gmra.mxu0 %v1474
    %v1485 = vpop.f32.mrf.mxu0
    %v1486 = vadd.f32 %v1447, %v1485
    %v1487 = vpop.f32.mrf.mxu0
    %1488 = vdwg.mxu0
    %v1489 = vmax.f32 %v1486, 0.0
    %v1490 = vpack.c.bf16 %v1489, %v1489
    %v1491 = vld [vmem:[%s9] sm:$0xf]
    %v1492 = vld [vmem:[%s9 + $0x4] sm:$0xf]
    %v1493 = vld [vmem:[%s9 + $0x8] sm:$0xf]
    %v1494 = vld [vmem:[%s9 + $0xc] sm:$0xf]
    %v1495 = vld [vmem:[%s9 + $0x10] sm:$0xf]
    %v1496 = vld [vmem:[%s9 + $0x14] sm:$0xf]
    %v1497 = vld [vmem:[%s9 + $0x18] sm:$0xf]
    %v1498 = vld [vmem:[%s9 + $0x1c] sm:$0xf]
    %v1499 = vld [vmem:[%s9 + $0x20] sm:$0xf]
    %v1500 = vld [vmem:[%s9 + $0x24] sm:$0xf]
    %v1501 = vld [vmem:[%s9 + $0x28] sm:$0xf]
    %v1502 = vld [vmem:[%s9 + $0x2c] sm:$0xf]
    %v1503 = vld [vmem:[%s9 + $0x30] sm:$0x3]
    %v1504 = vld [vmem:[%s10] sm:$0x1]
    %v1506 = vperm.slane %v1504, 0
    %v1521 = vunpack.c.l.b16 %v1491
    %v1522 = vunpack.c.l.b16 %v1492
    %v1523 = vunpack.c.l.b16 %v1493
    %v1524 = vunpack.c.l.b16 %v1494
    %v1525 = vunpack.c.l.b16 %v1495
    %v1526 = vunpack.c.l.b16 %v1496
    %v1527 = vunpack.c.l.b16 %v1497
    %v1528 = vunpack.c.l.b16 %v1498
    %v1529 = vunpack.c.l.b16 %v1499
    %v1530 = vunpack.c.l.b16 %v1500
    %v1531 = vunpack.c.l.b16 %v1501
    %v1532 = vunpack.c.l.b16 %v1502
    %v1533 = vunpack.c.l.b16 %v1503
    %v1534 = vpack.c.b16 %v1522, %v1521
    %v1535 = vpack.c.b16 %v1524, %v1523
    %v1536 = vpack.c.b16 %v1526, %v1525
    %v1537 = vpack.c.b16 %v1528, %v1527
    %v1538 = vpack.c.b16 %v1530, %v1529
    %v1539 = vpack.c.b16 %v1532, %v1531
    %v1540 = vpack.c.b16 %v1533, %v1533
    %vm1547 = vcmask 818176
    %v1549 = vsel %vm1547, %v1490, 0
    %v1552 = vsel %vm436, %v1540, 0
    %1554 = vmatpush.bf16.msra.mxu0 0
    %1555 = vmatpush.bf16.msra.mxu0 %v1552
    %1556 = vmatpush.bf16.msra.mxu0 %v1539
    %1557 = vmatpush.bf16.msra.mxu0 %v1538
    %1558 = vmatpush.bf16.msra.mxu0 %v1537
    %1559 = vmatpush.bf16.msra.mxu0 %v1536
    %1560 = vmatpush.bf16.msra.mxu0 %v1535
    %1561 = vmatpush.bf16.msra.mxu0 %v1534
    %1562 = vmatmul.bf16.gmra.mxu0 %v1549
    %v1563 = vpop.f32.mrf.mxu0
    %v1564 = vadd.f32 %v1506, %v1563
    %v1565 = vpop.f32.mrf.mxu0
    %1566 = vdwg.mxu0
    %vm1567 = vcmask 74752
    %1568 = vst.msk [vmem:[#allocation8] sm:$0x3] %vm1567, %v1564
    %v1569 = vsel %vm1567, %v1564, -inf
    %1570 = vmax.xlane.f32.xlu0 %v1569
    %v1571 = vpop.xlane.xlu0 %1570
    %v1572 = vlaneseq
    %v1573 = vand.u32 %v1572, 127
    %vm1574 = vcmp.eq.f32.partialorder %v1564, %v1571
    %v1575 = vsel %vm1574, %v1573, 10
    %v1576 = vsel %vm1567, %v1575, 2147483647
    %v1577 = vand.u32 %v1576, 65535
    %v1578 = vshra.s32 %v1576, 16
    %v1579 = vcvt.s32.f32 %v1577
    %v1580 = vcvt.s32.f32 %v1578
    %1581 = vmin.xlane.f32.xlu0 %v1580
    %v1582 = vpop.xlane.xlu0 %1581
    %vm1583 = vcmp.eq.f32.partialorder %v1580, %v1582
    %v1584 = vsel %vm1583, %v1579, inf
    %1585 = vmin.xlane.f32.xlu0 %v1584
    %v1586 = vpop.xlane.xlu0 %1585
    %v1587 = vcvt.f32.s32 %v1586
    %v1588 = vcvt.f32.s32 %v1582
    %v1589 = vshll.u32 %v1588, 16
    %v1590 = vadd.s32 %v1589, %v1587
    %vm1591 = vcmask 1024
    %1592 = vst.msk [vmem:[%s12] sm:$0x3] %vm1591, %v1590
    // Predicated region
    $region58: #{digit_classifier_forward.1} parent=1 // pred_check
      _
    $region59: #{digit_classifier_forward.1} parent=1 // pred_check_branch
      %1594 = sbr.rel (0) target = $region61
    $region60: #{digit_classifier_forward.1} parent=1 // pred_region
      %1596 = vsyncadd [#allocation4], 0
      %s1598 = sshll.u32 [#allocation8], 4
      %s1599 = int_to_ptr.vmem [resolvable:$true] %s1598
      %s1600 = sshll.u32 %s11, 4
      %s1601 = int_to_ptr.hbm [resolvable:$true] %s1600
      %1603 = dma.vmem_to_hbm [thread:$0]  %s1599, 32, %s1601, [#allocation4]
    $region61: #{digit_classifier_forward.1} parent=1 // pred_fallthru
      _
    // Predicated region
    $region62: #{digit_classifier_forward.1} parent=1 // pred_check
      _
    $region63: #{digit_classifier_forward.1} parent=1 // pred_check_branch
      %1605 = sbr.rel (0) target = $region65
    $region64: #{digit_classifier_forward.1} parent=1 // pred_region
      _
    $region65: #{digit_classifier_forward.1} parent=1 // pred_fallthru
      _
    // Predicated region
    $region66: #{digit_classifier_forward.1} parent=1 // pred_check
      _
    $region67: #{digit_classifier_forward.1} parent=1 // pred_check_branch
      %1607 = sbr.rel (0) target = $region69
    $region68: #{digit_classifier_forward.1} parent=1 // pred_region
      %1609 = dma.done [#allocation4], 32
    $region69: #{digit_classifier_forward.1} parent=1 // pred_fallthru
      _
    // Predicated region
    $region70: #{digit_classifier_forward.1} parent=1 // pred_check
      _
    $region71: #{digit_classifier_forward.1} parent=1 // pred_check_branch
      %1611 = sbr.rel (0) target = $region73
    $region72: #{digit_classifier_forward.1} parent=1 // pred_region
      _
    $region73: #{digit_classifier_forward.1} parent=1 // pred_fallthru
      _
    %1612 = vsyncpa [#allocation3], 1
    %1613 = vsyncpa [#allocation6], 1
    %1614 = vsyncpa [#allocation4], 1

</llo_original>
